<compile_context>
chip_gen: v6e
topology: v6e:2x2x1
jax: 0.10.0
libtpu: 0.0.40
codegen_flags: <defaults>
</compile_context>

<pallas_src>
import functools

import jax
import jax.numpy as jnp
from jax import lax
from jax.experimental import pallas as pl
from jax.experimental.pallas import tpu as pltpu

_EPS = 1e-12
# Scoped VMEM limit: fits v7x's 64 MiB physical VMEM with headroom, far under
# v5e/v6e's 128 MiB.
_VMEM_LIMIT = 48 * 1024 * 1024
# Budget for the double-buffered per-grid-step blocks.
_BLOCK_BUDGET = 32 * 1024 * 1024


def _pick_batch_tile(batch, per_row_bytes, resident_bytes, budget=_BLOCK_BUDGET):
    """Largest divisor of `batch` whose double-buffered per-step blocks fit the
    VMEM budget, preferring >= 2 grid steps so v7x's 2 TensorCores both get
    work.  All block shapes used below have their last two dims equal to the
    full array dims, so ANY divisor of `batch` is legal (no multiple-of-8
    constraint / single-block fallback cliff)."""
    divs = [d for d in range(1, batch + 1) if batch % d == 0]
    fit = [d for d in divs if resident_bytes + 2 * d * per_row_bytes <= budget] or [1]
    multi = [d for d in fit if batch // d >= 2]
    return max(multi) if multi else max(fit)


# ---------------------------------------------------------------------------
# Kernel 1: per batch tile -> mean over seq, L2-normalize, similarity matmul,
#           and fused copy of x_embed into rows [KL:T) of prompted_embedding
#           (x_embed is read from HBM exactly once for the whole forward).
# ---------------------------------------------------------------------------
def sim_kernel(x_ref, kn_ref, sim_ref, xn_ref, pe_ref):
    # x_ref  : (TB, S, D)
    # kn_ref : (P, D)     L2-normalized keys, VMEM-resident (constant index_map)
    # sim_ref: (TB, 1, P) similarity
    # xn_ref : (TB, 1, D) normalized mean embedding
    # pe_ref : (TB, T, D) prompted_embedding tile; rows [KL:T) <- x_embed here,
    #                     rows [0:KL) are filled later by assemble_kernel via
    #                     the aliased HBM buffer.
    s_len = x_ref.shape[1]
    kl = pe_ref.shape[1] - s_len

    x = x_ref[...]
    # Fused concat tail: x_embed occupies rows [KL, KL+S).
    # TODO(synk): KL is generally not a multiple of 8, so this bulk store is
    # sublane-misaligned (masked stores / XLU shifts); the prompt region cannot
    # be padded without changing the module's output layout.
    pe_ref[:, kl:, :] = x.astype(pe_ref.dtype)

    xf = x.astype(jnp.float32)
    x_sum = jnp.sum(xf, axis=1)                                  # (TB, D)
    sq = jnp.sum(x_sum * x_sum, axis=1, keepdims=True)           # (TB, 1)
    # l2_normalize(mean(x)) == sum(x) * rsqrt(max(sum_sq, eps * S^2)):
    # using the sum saves a (TB, D) multiply; mathematically identical.
    xn = x_sum * lax.rsqrt(jnp.maximum(sq, jnp.float32(_EPS * s_len * s_len)))

    # similarity = x_norm @ prompt_norm.T  (contract D with D on the MXU).
    sim = lax.dot_general(xn, kn_ref[...], (((1,), (1,)), ((), ())),
                          preferred_element_type=jnp.float32)    # (TB, P)
    sim_ref[:, 0, :] = sim
    xn_ref[:, 0, :] = xn


# ---------------------------------------------------------------------------
# Kernel 2: gather the selected prompts (pool VMEM-resident, indices in SMEM),
#           build the (TB, KL, D) tile ONCE in VMEM, then DMA it to both
#           batched_prompt and rows [0:KL) of the aliased prompted_embedding
#           buffer (rows [KL:T) already hold x_embed from sim_kernel).
# ---------------------------------------------------------------------------
def assemble_kernel(idx_ref, pool_ref, pe_in_ref, bp_hbm, pe_hbm, stage, sems):
    del pe_in_ref  # only present so its buffer is donated to pe_hbm (aliased).
    i = pl.program_id(0)
    tb, kl, _ = stage.shape
    _, length, _ = pool_ref.shape
    top_k = kl // length

    # On-chip gather: the pool never leaves VMEM; indices are SMEM scalars.
    # TODO(synk): L is generally not a multiple of 8, so each (L, D) copy is a
    # sublane-misaligned load/store; negligible next to the HBM DMAs below.
    # TODO(synk): indices are not bounds-checked (prompt_mask path trusts caller).
    for b in range(tb):
        for k in range(top_k):
            p = idx_ref[(i * tb + b) * top_k + k]
            stage[b, k * length:(k + 1) * length, :] = (
                pool_ref[p].astype(stage.dtype))

    row0 = i * tb
    cp_bp = pltpu.make_async_copy(stage, bp_hbm.at[pl.ds(row0, tb)], sems.at[0])
    cp_pe = pltpu.make_async_copy(
        stage, pe_hbm.at[pl.ds(row0, tb), pl.ds(0, kl)], sems.at[1])
    cp_bp.start()
    cp_pe.start()
    cp_bp.wait()
    cp_pe.wait()


# ---------------------------------------------------------------------------
# Python wrapper
# ---------------------------------------------------------------------------
@functools.partial(jax.jit, static_argnums=(3,))
def prompt_forward(x_embed, prompt, prompt_key, top_k, prompt_mask=None):
    B, S, D = x_embed.shape
    P, L, _ = prompt.shape
    KL = top_k * L
    T = KL + S
    isz = jnp.dtype(x_embed.dtype).itemsize

    # --- prompt-key L2 normalization: tiny (P, D) op, plain JAX --------------
    kf = prompt_key.astype(jnp.float32)
    k_sq = jnp.sum(kf * kf, axis=1, keepdims=True)
    prompt_norm = kf * lax.rsqrt(jnp.maximum(k_sq, jnp.float32(_EPS)))

    # --- batch tile: VMEM-budget aware, any divisor of B is legal ------------
    per_row = (S + T) * D * isz + (P + D) * 4
    resident = 2 * P * D * 4
    tb = _pick_batch_tile(B, per_row, resident)
    grid = (B // tb,)

    # --- similarity + fused x_embed -> prompted_embedding tail ---------------
    sim_cost = pl.CostEstimate(
        flops=int(2 * B * D * P + 4 * B * S * D),
        transcendentals=int(B),
        bytes_accessed=int(B * (S + T) * D * isz + B * (P + D) * 4 + P * D * 4))
    sim3, xn3, pe_partial = pl.pallas_call(
        sim_kernel,
        out_shape=(jax.ShapeDtypeStruct((B, 1, P), jnp.float32),
                   jax.ShapeDtypeStruct((B, 1, D), jnp.float32),
                   jax.ShapeDtypeStruct((B, T, D), x_embed.dtype)),
        grid=grid,
        in_specs=[pl.BlockSpec((tb, S, D), lambda i: (i, 0, 0)),
                  pl.BlockSpec((P, D), lambda i: (0, 0))],
        out_specs=(pl.BlockSpec((tb, 1, P), lambda i: (i, 0, 0)),
                   pl.BlockSpec((tb, 1, D), lambda i: (i, 0, 0)),
                   pl.BlockSpec((tb, T, D), lambda i: (i, 0, 0))),
        compiler_params=pltpu.CompilerParams(
            dimension_semantics=("parallel",),
            vmem_limit_bytes=_VMEM_LIMIT),
        cost_estimate=sim_cost,
    )(x_embed, prompt_norm)

    similarity = sim3.reshape(B, P)
    x_embed_norm = xn3.reshape(B, D)

    # --- top-k prompt selection (plain JAX) -----------------------------------
    if prompt_mask is None:
        _, idx = lax.top_k(similarity, top_k)        # (B, top_k)
    else:
        idx = prompt_mask
    idx = idx.astype(jnp.int32)
    idx_flat = idx.reshape(-1)                       # (B * top_k,)

    # --- gather + write prompt rows into the aliased prompted buffer ----------
    asm_cost = pl.CostEstimate(
        flops=0, transcendentals=0,
        bytes_accessed=int(2 * B * KL * D * isz + P * L * D * 4 + B * top_k * 4))
    batched_prompt, prompted = pl.pallas_call(
        assemble_kernel,
        out_shape=(jax.ShapeDtypeStruct((B, KL, D), x_embed.dtype),
                   jax.ShapeDtypeStruct((B, T, D), x_embed.dtype)),
        grid=grid,
        in_specs=[pl.BlockSpec(memory_space=pltpu.MemorySpace.SMEM),   # idx
                  pl.BlockSpec((P, L, D), lambda i: (0, 0, 0)),        # pool (resident)
                  pl.BlockSpec(memory_space=pl.ANY)],                  # pe_partial
        out_specs=(pl.BlockSpec(memory_space=pl.ANY),                  # batched_prompt
                   pl.BlockSpec(memory_space=pl.ANY)),                 # prompted (aliased)
        scratch_shapes=[pltpu.VMEM((tb, KL, D), x_embed.dtype),
                        pltpu.SemaphoreType.DMA((2,))],
        input_output_aliases={2: 1},   # pe_partial buffer IS prompted_embedding
        compiler_params=pltpu.CompilerParams(
            dimension_semantics=("parallel",),
            vmem_limit_bytes=_VMEM_LIMIT),
        cost_estimate=asm_cost,
    )(idx_flat, prompt, pe_partial)

    return {
        'prompt_idx': idx,
        'prompt_norm': prompt_norm,
        'x_embed_norm': x_embed_norm,
        'similarity': similarity,
        'batched_prompt': batched_prompt,
        'prompted_embedding': prompted,
        'prompt_all': prompt,
    }


# ---------------------------------------------------------------------------
# Pure-JAX reference (correctness check)
# ---------------------------------------------------------------------------
def _l2_normalize(x, axis, eps=_EPS):
    sq = jnp.sum(x * x, axis=axis, keepdims=True)
    return x * lax.rsqrt(jnp.maximum(sq, eps))


def prompt_forward_ref(x_embed, prompt, prompt_key, top_k):
    B = x_embed.shape[0]
    _, L, D = prompt.shape
    x_mean = jnp.mean(x_embed, axis=1)
    x_norm = _l2_normalize(x_mean, 1)
    k_norm = _l2_normalize(prompt_key, 1)
    sim = x_norm @ k_norm.T
    _, idx = lax.top_k(sim, top_k)
    bp = prompt[idx].reshape(B, top_k * L, D)
    pe = jnp.concatenate([bp, x_embed], axis=1)
    return sim, x_norm, k_norm, idx, bp, pe


if __name__ == "__main__":
    # Small but representative shapes (B > tile so both grids have >1 step).
    B, S, D = 16, 8, 128         # batch, seq, embed_dim
    P, L, TOP_K = 8, 5, 2        # pool_size, prompt length, top_k

    key = jax.random.PRNGKey(0)
    k_x, k_prompt, k_key = jax.random.split(key, 3)

    x_embed = jax.random.normal(k_x, (B, S, D), dtype=jnp.float32)
    # nn.init.uniform_(-1, 1) equivalents:
    prompt = jax.random.uniform(k_prompt, (P, L, D), jnp.float32, -1.0, 1.0)
    prompt_key_param = jax.random.uniform(k_key, (P, D), jnp.float32, -1.0, 1.0)

    out = prompt_forward(x_embed, prompt, prompt_key_param, TOP_K)
    jax.block_until_ready(out['prompted_embedding'])

    # sanity check against the pure-JAX reference
    sim_r, xn_r, kn_r, idx_r, bp_r, pe_r = prompt_forward_ref(
        x_embed, prompt, prompt_key_param, TOP_K)
    assert out['prompted_embedding'].shape == (B, TOP_K * L + S, D)
    assert jnp.allclose(out['similarity'], sim_r, atol=1e-5)
    assert jnp.allclose(out['x_embed_norm'], xn_r, atol=1e-5)
    assert jnp.allclose(out['prompt_norm'], kn_r, atol=1e-6)
    assert jnp.array_equal(out['prompt_idx'], idx_r)
    assert jnp.allclose(out['batched_prompt'], bp_r)
    assert jnp.allclose(out['prompted_embedding'], pe_r)

    print("KERNEL_OK")
</pallas_src>

<mosaic_0001>
module attributes {stable_mosaic.version = 11 : i64} {
  func.func @sim_kernel(%arg0: i32, %arg1: memref<8x8x128xf32, #tpu.memory_space<vmem>>, %arg2: memref<8x128xf32, #tpu.memory_space<vmem>>, %arg3: memref<8x1x8xf32, #tpu.memory_space<vmem>>, %arg4: memref<8x1x128xf32, #tpu.memory_space<vmem>>, %arg5: memref<8x18x128xf32, #tpu.memory_space<vmem>>) attributes {dimension_semantics = [#tpu.dimension_semantics<parallel>], iteration_bounds = array<i64: 2>, scalar_prefetch = 0 : i64, scratch_operands = 0 : i64, tpu.core_type = #tpu.core_type<tc>, window_params = [{transform_indices = @transform_0, window_bounds = array<i64: 8, 8, 128>}, {pipeline_mode = #tpu.pipeline_mode<synchronous>, transform_indices = @transform_1, window_bounds = array<i64: 8, 128>}, {transform_indices = @transform_2, window_bounds = array<i64: 8, 1, 8>}, {transform_indices = @transform_3, window_bounds = array<i64: 8, 1, 128>}, {transform_indices = @transform_4, window_bounds = array<i64: 8, 18, 128>}]} {
    %c0 = arith.constant 0 : index
    %c0_0 = arith.constant 0 : index
    %c0_1 = arith.constant 0 : index
    %0 = vector.load %arg1[%c0, %c0_0, %c0_1] : memref<8x8x128xf32, #tpu.memory_space<vmem>>, vector<8x8x128xf32>
    %c0_2 = arith.constant 0 : index
    %c10 = arith.constant 10 : index
    %c0_3 = arith.constant 0 : index
    %1 = vector.load %arg5[%c0_2, %c10, %c0_3] : memref<8x18x128xf32, #tpu.memory_space<vmem>>, vector<8x8x128xf32>
    tpu.vector_store %arg5[%c0_2, %c10, %c0_3], %0 {strides = array<i32>} : memref<8x18x128xf32, #tpu.memory_space<vmem>>, vector<8x8x128xf32>,
    %cst = arith.constant dense<0.000000e+00> : vector<8x128xf32>
    %2 = vector.multi_reduction <add>, %0, %cst [1] : vector<8x8x128xf32> to vector<8x128xf32>
    %3 = arith.mulf %2, %2 : vector<8x128xf32>
    %cst_4 = arith.constant dense<0.000000e+00> : vector<8xf32>
    %4 = vector.multi_reduction <add>, %3, %cst_4 [1] : vector<8x128xf32> to vector<8xf32>
    %5 = vector.shape_cast %4 : vector<8xf32> to vector<8x1xf32>
    %cst_5 = arith.constant 6.400000e-11 : f32
    %6 = vector.broadcast %cst_5 : f32 to vector<8x1xf32>
    %7 = arith.maximumf %5, %6 : vector<8x1xf32>
    %8 = math.rsqrt %7 : vector<8x1xf32>
    %9 = vector.broadcast %8 : vector<8x1xf32> to vector<8x128xf32>
    %10 = arith.mulf %2, %9 : vector<8x128xf32>
    %c0_6 = arith.constant 0 : index
    %c0_7 = arith.constant 0 : index
    %11 = vector.load %arg2[%c0_6, %c0_7] : memref<8x128xf32, #tpu.memory_space<vmem>>, vector<8x128xf32>
    %cst_8 = arith.constant dense<0.000000e+00> : vector<8x8xf32>
    %12 = tpu.matmul %10, %11, %cst_8 {dimension_numbers = #tpu.dot_dimension_numbers<[1], [1], [0], [0], [0, 0, 1, 0], [], []>} : vector<8x128xf32>, vector<8x128xf32>, vector<8x8xf32> -> vector<8x8xf32>
    %c0_9 = arith.constant 0 : index
    %c0_10 = arith.constant 0 : index
    %c0_11 = arith.constant 0 : index
    %13 = vector.load %arg3[%c0_9, %c0_10, %c0_11] : memref<8x1x8xf32, #tpu.memory_space<vmem>>, vector<8x1x8xf32>
    %14 = vector.shape_cast %13 : vector<8x1x8xf32> to vector<8x8xf32>
    %15 = vector.shape_cast %12 : vector<8x8xf32> to vector<8x1x8xf32>
    tpu.vector_store %arg3[%c0_9, %c0_10, %c0_11], %15 {strides = array<i32>} : memref<8x1x8xf32, #tpu.memory_space<vmem>>, vector<8x1x8xf32>,
    %c0_12 = arith.constant 0 : index
    %c0_13 = arith.constant 0 : index
    %c0_14 = arith.constant 0 : index
    %16 = vector.load %arg4[%c0_12, %c0_13, %c0_14] : memref<8x1x128xf32, #tpu.memory_space<vmem>>, vector<8x1x128xf32>
    %17 = vector.shape_cast %16 : vector<8x1x128xf32> to vector<8x128xf32>
    %18 = vector.shape_cast %10 : vector<8x128xf32> to vector<8x1x128xf32>
    tpu.vector_store %arg4[%c0_12, %c0_13, %c0_14], %18 {strides = array<i32>} : memref<8x1x128xf32, #tpu.memory_space<vmem>>, vector<8x1x128xf32>,
    return
  }
  func.func @transform_0(%arg0: i32) -> (i32, i32, i32) {
    %c0_i32 = arith.constant 0 : i32
    %c0_i32_0 = arith.constant 0 : i32
    %c0_i32_1 = arith.constant 0 : i32
    return %arg0, %c0_i32, %c0_i32_0 : i32, i32, i32
  }
  func.func @transform_1(%arg0: i32) -> (i32, i32) {
    %c0_i32 = arith.constant 0 : i32
    %c0_i32_0 = arith.constant 0 : i32
    %c0_i32_1 = arith.constant 0 : i32
    return %c0_i32, %c0_i32_0 : i32, i32
  }
  func.func @transform_2(%arg0: i32) -> (i32, i32, i32) {
    %c0_i32 = arith.constant 0 : i32
    %c0_i32_0 = arith.constant 0 : i32
    %c0_i32_1 = arith.constant 0 : i32
    return %arg0, %c0_i32, %c0_i32_0 : i32, i32, i32
  }
  func.func @transform_3(%arg0: i32) -> (i32, i32, i32) {
    %c0_i32 = arith.constant 0 : i32
    %c0_i32_0 = arith.constant 0 : i32
    %c0_i32_1 = arith.constant 0 : i32
    return %arg0, %c0_i32, %c0_i32_0 : i32, i32, i32
  }
  func.func @transform_4(%arg0: i32) -> (i32, i32, i32) {
    %c0_i32 = arith.constant 0 : i32
    %c0_i32_0 = arith.constant 0 : i32
    %c0_i32_1 = arith.constant 0 : i32
    return %arg0, %c0_i32, %c0_i32_0 : i32, i32, i32
  }
}

module attributes {stable_mosaic.version = 11 : i64} {
  func.func @assemble_kernel(%arg0: i32, %arg1: memref<32xi32, #tpu.memory_space<smem>>, %arg2: memref<8x5x128xf32, #tpu.memory_space<vmem>>, %arg3: memref<16x18x128xf32, #tpu.memory_space<any>>, %arg4: memref<16x10x128xf32, #tpu.memory_space<any>>, %arg5: memref<16x18x128xf32, #tpu.memory_space<any>>, %arg6: memref<8x10x128xf32, #tpu.memory_space<vmem>>, %arg7: memref<2x!tpu.dma_semaphore, #tpu.memory_space<semaphore_mem>>) attributes {dimension_semantics = [#tpu.dimension_semantics<parallel>], iteration_bounds = array<i64: 2>, scalar_prefetch = 0 : i64, scratch_operands = 2 : i64, tpu.core_type = #tpu.core_type<tc>, window_params = [{transform_indices = @transform_0, window_bounds = array<i64: 32>}, {pipeline_mode = #tpu.pipeline_mode<synchronous>, transform_indices = @transform_1, window_bounds = array<i64: 8, 5, 128>}, {}, {}, {}]} {
    %c8_i32 = arith.constant 8 : i32
    %0 = arith.muli %arg0, %c8_i32 : i32
    %c0_i32 = arith.constant 0 : i32
    %1 = arith.addi %0, %c0_i32 : i32
    %c2_i32 = arith.constant 2 : i32
    %2 = arith.muli %1, %c2_i32 : i32
    %c0_i32_0 = arith.constant 0 : i32
    %3 = arith.addi %2, %c0_i32_0 : i32
    %4 = arith.index_cast %3 : i32 to index
    %5 = memref.load %arg1[%4] : memref<32xi32, #tpu.memory_space<smem>>
    %6 = arith.index_cast %5 : i32 to index
    %c0 = arith.constant 0 : index
    %c0_1 = arith.constant 0 : index
    %7 = vector.load %arg2[%6, %c0, %c0_1] : memref<8x5x128xf32, #tpu.memory_space<vmem>>, vector<1x5x128xf32>
    %8 = vector.shape_cast %7 : vector<1x5x128xf32> to vector<5x128xf32>
    %c0_2 = arith.constant 0 : index
    %c0_3 = arith.constant 0 : index
    %c0_4 = arith.constant 0 : index
    %9 = vector.load %arg6[%c0_2, %c0_3, %c0_4] : memref<8x10x128xf32, #tpu.memory_space<vmem>>, vector<1x5x128xf32>
    %10 = vector.shape_cast %9 : vector<1x5x128xf32> to vector<5x128xf32>
    %11 = vector.shape_cast %8 : vector<5x128xf32> to vector<1x5x128xf32>
    tpu.vector_store %arg6[%c0_2, %c0_3, %c0_4], %11 {strides = array<i32>} : memref<8x10x128xf32, #tpu.memory_space<vmem>>, vector<1x5x128xf32>,
    %c8_i32_5 = arith.constant 8 : i32
    %12 = arith.muli %arg0, %c8_i32_5 : i32
    %c0_i32_6 = arith.constant 0 : i32
    %13 = arith.addi %12, %c0_i32_6 : i32
    %c2_i32_7 = arith.constant 2 : i32
    %14 = arith.muli %13, %c2_i32_7 : i32
    %c1_i32 = arith.constant 1 : i32
    %15 = arith.addi %14, %c1_i32 : i32
    %16 = arith.index_cast %15 : i32 to index
    %17 = memref.load %arg1[%16] : memref<32xi32, #tpu.memory_space<smem>>
    %18 = arith.index_cast %17 : i32 to index
    %c0_8 = arith.constant 0 : index
    %c0_9 = arith.constant 0 : index
    %19 = vector.load %arg2[%18, %c0_8, %c0_9] : memref<8x5x128xf32, #tpu.memory_space<vmem>>, vector<1x5x128xf32>
    %20 = vector.shape_cast %19 : vector<1x5x128xf32> to vector<5x128xf32>
    %c0_10 = arith.constant 0 : index
    %c5 = arith.constant 5 : index
    %c0_11 = arith.constant 0 : index
    %21 = vector.load %arg6[%c0_10, %c5, %c0_11] : memref<8x10x128xf32, #tpu.memory_space<vmem>>, vector<1x5x128xf32>
    %22 = vector.shape_cast %21 : vector<1x5x128xf32> to vector<5x128xf32>
    %23 = vector.shape_cast %20 : vector<5x128xf32> to vector<1x5x128xf32>
    tpu.vector_store %arg6[%c0_10, %c5, %c0_11], %23 {strides = array<i32>} : memref<8x10x128xf32, #tpu.memory_space<vmem>>, vector<1x5x128xf32>,
    %c8_i32_12 = arith.constant 8 : i32
    %24 = arith.muli %arg0, %c8_i32_12 : i32
    %c1_i32_13 = arith.constant 1 : i32
    %25 = arith.addi %24, %c1_i32_13 : i32
    %c2_i32_14 = arith.constant 2 : i32
    %26 = arith.muli %25, %c2_i32_14 : i32
    %c0_i32_15 = arith.constant 0 : i32
    %27 = arith.addi %26, %c0_i32_15 : i32
    %28 = arith.index_cast %27 : i32 to index
    %29 = memref.load %arg1[%28] : memref<32xi32, #tpu.memory_space<smem>>
    %30 = arith.index_cast %29 : i32 to index
    %c0_16 = arith.constant 0 : index
    %c0_17 = arith.constant 0 : index
    %31 = vector.load %arg2[%30, %c0_16, %c0_17] : memref<8x5x128xf32, #tpu.memory_space<vmem>>, vector<1x5x128xf32>
    %32 = vector.shape_cast %31 : vector<1x5x128xf32> to vector<5x128xf32>
    %c1 = arith.constant 1 : index
    %c0_18 = arith.constant 0 : index
    %c0_19 = arith.constant 0 : index
    %33 = vector.load %arg6[%c1, %c0_18, %c0_19] : memref<8x10x128xf32, #tpu.memory_space<vmem>>, vector<1x5x128xf32>
    %34 = vector.shape_cast %33 : vector<1x5x128xf32> to vector<5x128xf32>
    %35 = vector.shape_cast %32 : vector<5x128xf32> to vector<1x5x128xf32>
    tpu.vector_store %arg6[%c1, %c0_18, %c0_19], %35 {strides = array<i32>} : memref<8x10x128xf32, #tpu.memory_space<vmem>>, vector<1x5x128xf32>,
    %c8_i32_20 = arith.constant 8 : i32
    %36 = arith.muli %arg0, %c8_i32_20 : i32
    %c1_i32_21 = arith.constant 1 : i32
    %37 = arith.addi %36, %c1_i32_21 : i32
    %c2_i32_22 = arith.constant 2 : i32
    %38 = arith.muli %37, %c2_i32_22 : i32
    %c1_i32_23 = arith.constant 1 : i32
    %39 = arith.addi %38, %c1_i32_23 : i32
    %40 = arith.index_cast %39 : i32 to index
    %41 = memref.load %arg1[%40] : memref<32xi32, #tpu.memory_space<smem>>
    %42 = arith.index_cast %41 : i32 to index
    %c0_24 = arith.constant 0 : index
    %c0_25 = arith.constant 0 : index
    %43 = vector.load %arg2[%42, %c0_24, %c0_25] : memref<8x5x128xf32, #tpu.memory_space<vmem>>, vector<1x5x128xf32>
    %44 = vector.shape_cast %43 : vector<1x5x128xf32> to vector<5x128xf32>
    %c1_26 = arith.constant 1 : index
    %c5_27 = arith.constant 5 : index
    %c0_28 = arith.constant 0 : index
    %45 = vector.load %arg6[%c1_26, %c5_27, %c0_28] : memref<8x10x128xf32, #tpu.memory_space<vmem>>, vector<1x5x128xf32>
    %46 = vector.shape_cast %45 : vector<1x5x128xf32> to vector<5x128xf32>
    %47 = vector.shape_cast %44 : vector<5x128xf32> to vector<1x5x128xf32>
    tpu.vector_store %arg6[%c1_26, %c5_27, %c0_28], %47 {strides = array<i32>} : memref<8x10x128xf32, #tpu.memory_space<vmem>>, vector<1x5x128xf32>,
    %c8_i32_29 = arith.constant 8 : i32
    %48 = arith.muli %arg0, %c8_i32_29 : i32
    %c2_i32_30 = arith.constant 2 : i32
    %49 = arith.addi %48, %c2_i32_30 : i32
    %c2_i32_31 = arith.constant 2 : i32
    %50 = arith.muli %49, %c2_i32_31 : i32
    %c0_i32_32 = arith.constant 0 : i32
    %51 = arith.addi %50, %c0_i32_32 : i32
    %52 = arith.index_cast %51 : i32 to index
    %53 = memref.load %arg1[%52] : memref<32xi32, #tpu.memory_space<smem>>
    %54 = arith.index_cast %53 : i32 to index
    %c0_33 = arith.constant 0 : index
    %c0_34 = arith.constant 0 : index
    %55 = vector.load %arg2[%54, %c0_33, %c0_34] : memref<8x5x128xf32, #tpu.memory_space<vmem>>, vector<1x5x128xf32>
    %56 = vector.shape_cast %55 : vector<1x5x128xf32> to vector<5x128xf32>
    %c2 = arith.constant 2 : index
    %c0_35 = arith.constant 0 : index
    %c0_36 = arith.constant 0 : index
    %57 = vector.load %arg6[%c2, %c0_35, %c0_36] : memref<8x10x128xf32, #tpu.memory_space<vmem>>, vector<1x5x128xf32>
    %58 = vector.shape_cast %57 : vector<1x5x128xf32> to vector<5x128xf32>
    %59 = vector.shape_cast %56 : vector<5x128xf32> to vector<1x5x128xf32>
    tpu.vector_store %arg6[%c2, %c0_35, %c0_36], %59 {strides = array<i32>} : memref<8x10x128xf32, #tpu.memory_space<vmem>>, vector<1x5x128xf32>,
    %c8_i32_37 = arith.constant 8 : i32
    %60 = arith.muli %arg0, %c8_i32_37 : i32
    %c2_i32_38 = arith.constant 2 : i32
    %61 = arith.addi %60, %c2_i32_38 : i32
    %c2_i32_39 = arith.constant 2 : i32
    %62 = arith.muli %61, %c2_i32_39 : i32
    %c1_i32_40 = arith.constant 1 : i32
    %63 = arith.addi %62, %c1_i32_40 : i32
    %64 = arith.index_cast %63 : i32 to index
    %65 = memref.load %arg1[%64] : memref<32xi32, #tpu.memory_space<smem>>
    %66 = arith.index_cast %65 : i32 to index
    %c0_41 = arith.constant 0 : index
    %c0_42 = arith.constant 0 : index
    %67 = vector.load %arg2[%66, %c0_41, %c0_42] : memref<8x5x128xf32, #tpu.memory_space<vmem>>, vector<1x5x128xf32>
    %68 = vector.shape_cast %67 : vector<1x5x128xf32> to vector<5x128xf32>
    %c2_43 = arith.constant 2 : index
    %c5_44 = arith.constant 5 : index
    %c0_45 = arith.constant 0 : index
    %69 = vector.load %arg6[%c2_43, %c5_44, %c0_45] : memref<8x10x128xf32, #tpu.memory_space<vmem>>, vector<1x5x128xf32>
    %70 = vector.shape_cast %69 : vector<1x5x128xf32> to vector<5x128xf32>
    %71 = vector.shape_cast %68 : vector<5x128xf32> to vector<1x5x128xf32>
    tpu.vector_store %arg6[%c2_43, %c5_44, %c0_45], %71 {strides = array<i32>} : memref<8x10x128xf32, #tpu.memory_space<vmem>>, vector<1x5x128xf32>,
    %c8_i32_46 = arith.constant 8 : i32
    %72 = arith.muli %arg0, %c8_i32_46 : i32
    %c3_i32 = arith.constant 3 : i32
    %73 = arith.addi %72, %c3_i32 : i32
    %c2_i32_47 = arith.constant 2 : i32
    %74 = arith.muli %73, %c2_i32_47 : i32
    %c0_i32_48 = arith.constant 0 : i32
    %75 = arith.addi %74, %c0_i32_48 : i32
    %76 = arith.index_cast %75 : i32 to index
    %77 = memref.load %arg1[%76] : memref<32xi32, #tpu.memory_space<smem>>
    %78 = arith.index_cast %77 : i32 to index
    %c0_49 = arith.constant 0 : index
    %c0_50 = arith.constant 0 : index
    %79 = vector.load %arg2[%78, %c0_49, %c0_50] : memref<8x5x128xf32, #tpu.memory_space<vmem>>, vector<1x5x128xf32>
    %80 = vector.shape_cast %79 : vector<1x5x128xf32> to vector<5x128xf32>
    %c3 = arith.constant 3 : index
    %c0_51 = arith.constant 0 : index
    %c0_52 = arith.constant 0 : index
    %81 = vector.load %arg6[%c3, %c0_51, %c0_52] : memref<8x10x128xf32, #tpu.memory_space<vmem>>, vector<1x5x128xf32>
    %82 = vector.shape_cast %81 : vector<1x5x128xf32> to vector<5x128xf32>
    %83 = vector.shape_cast %80 : vector<5x128xf32> to vector<1x5x128xf32>
    tpu.vector_store %arg6[%c3, %c0_51, %c0_52], %83 {strides = array<i32>} : memref<8x10x128xf32, #tpu.memory_space<vmem>>, vector<1x5x128xf32>,
    %c8_i32_53 = arith.constant 8 : i32
    %84 = arith.muli %arg0, %c8_i32_53 : i32
    %c3_i32_54 = arith.constant 3 : i32
    %85 = arith.addi %84, %c3_i32_54 : i32
    %c2_i32_55 = arith.constant 2 : i32
    %86 = arith.muli %85, %c2_i32_55 : i32
    %c1_i32_56 = arith.constant 1 : i32
    %87 = arith.addi %86, %c1_i32_56 : i32
    %88 = arith.index_cast %87 : i32 to index
    %89 = memref.load %arg1[%88] : memref<32xi32, #tpu.memory_space<smem>>
    %90 = arith.index_cast %89 : i32 to index
    %c0_57 = arith.constant 0 : index
    %c0_58 = arith.constant 0 : index
    %91 = vector.load %arg2[%90, %c0_57, %c0_58] : memref<8x5x128xf32, #tpu.memory_space<vmem>>, vector<1x5x128xf32>
    %92 = vector.shape_cast %91 : vector<1x5x128xf32> to vector<5x128xf32>
    %c3_59 = arith.constant 3 : index
    %c5_60 = arith.constant 5 : index
    %c0_61 = arith.constant 0 : index
    %93 = vector.load %arg6[%c3_59, %c5_60, %c0_61] : memref<8x10x128xf32, #tpu.memory_space<vmem>>, vector<1x5x128xf32>
    %94 = vector.shape_cast %93 : vector<1x5x128xf32> to vector<5x128xf32>
    %95 = vector.shape_cast %92 : vector<5x128xf32> to vector<1x5x128xf32>
    tpu.vector_store %arg6[%c3_59, %c5_60, %c0_61], %95 {strides = array<i32>} : memref<8x10x128xf32, #tpu.memory_space<vmem>>, vector<1x5x128xf32>,
    %c8_i32_62 = arith.constant 8 : i32
    %96 = arith.muli %arg0, %c8_i32_62 : i32
    %c4_i32 = arith.constant 4 : i32
    %97 = arith.addi %96, %c4_i32 : i32
    %c2_i32_63 = arith.constant 2 : i32
    %98 = arith.muli %97, %c2_i32_63 : i32
    %c0_i32_64 = arith.constant 0 : i32
    %99 = arith.addi %98, %c0_i32_64 : i32
    %100 = arith.index_cast %99 : i32 to index
    %101 = memref.load %arg1[%100] : memref<32xi32, #tpu.memory_space<smem>>
    %102 = arith.index_cast %101 : i32 to index
    %c0_65 = arith.constant 0 : index
    %c0_66 = arith.constant 0 : index
    %103 = vector.load %arg2[%102, %c0_65, %c0_66] : memref<8x5x128xf32, #tpu.memory_space<vmem>>, vector<1x5x128xf32>
    %104 = vector.shape_cast %103 : vector<1x5x128xf32> to vector<5x128xf32>
    %c4 = arith.constant 4 : index
    %c0_67 = arith.constant 0 : index
    %c0_68 = arith.constant 0 : index
    %105 = vector.load %arg6[%c4, %c0_67, %c0_68] : memref<8x10x128xf32, #tpu.memory_space<vmem>>, vector<1x5x128xf32>
    %106 = vector.shape_cast %105 : vector<1x5x128xf32> to vector<5x128xf32>
    %107 = vector.shape_cast %104 : vector<5x128xf32> to vector<1x5x128xf32>
    tpu.vector_store %arg6[%c4, %c0_67, %c0_68], %107 {strides = array<i32>} : memref<8x10x128xf32, #tpu.memory_space<vmem>>, vector<1x5x128xf32>,
    %c8_i32_69 = arith.constant 8 : i32
    %108 = arith.muli %arg0, %c8_i32_69 : i32
    %c4_i32_70 = arith.constant 4 : i32
    %109 = arith.addi %108, %c4_i32_70 : i32
    %c2_i32_71 = arith.constant 2 : i32
    %110 = arith.muli %109, %c2_i32_71 : i32
    %c1_i32_72 = arith.constant 1 : i32
    %111 = arith.addi %110, %c1_i32_72 : i32
    %112 = arith.index_cast %111 : i32 to index
    %113 = memref.load %arg1[%112] : memref<32xi32, #tpu.memory_space<smem>>
    %114 = arith.index_cast %113 : i32 to index
    %c0_73 = arith.constant 0 : index
    %c0_74 = arith.constant 0 : index
    %115 = vector.load %arg2[%114, %c0_73, %c0_74] : memref<8x5x128xf32, #tpu.memory_space<vmem>>, vector<1x5x128xf32>
    %116 = vector.shape_cast %115 : vector<1x5x128xf32> to vector<5x128xf32>
    %c4_75 = arith.constant 4 : index
    %c5_76 = arith.constant 5 : index
    %c0_77 = arith.constant 0 : index
    %117 = vector.load %arg6[%c4_75, %c5_76, %c0_77] : memref<8x10x128xf32, #tpu.memory_space<vmem>>, vector<1x5x128xf32>
    %118 = vector.shape_cast %117 : vector<1x5x128xf32> to vector<5x128xf32>
    %119 = vector.shape_cast %116 : vector<5x128xf32> to vector<1x5x128xf32>
    tpu.vector_store %arg6[%c4_75, %c5_76, %c0_77], %119 {strides = array<i32>} : memref<8x10x128xf32, #tpu.memory_space<vmem>>, vector<1x5x128xf32>,
    %c8_i32_78 = arith.constant 8 : i32
    %120 = arith.muli %arg0, %c8_i32_78 : i32
    %c5_i32 = arith.constant 5 : i32
    %121 = arith.addi %120, %c5_i32 : i32
    %c2_i32_79 = arith.constant 2 : i32
    %122 = arith.muli %121, %c2_i32_79 : i32
    %c0_i32_80 = arith.constant 0 : i32
    %123 = arith.addi %122, %c0_i32_80 : i32
    %124 = arith.index_cast %123 : i32 to index
    %125 = memref.load %arg1[%124] : memref<32xi32, #tpu.memory_space<smem>>
    %126 = arith.index_cast %125 : i32 to index
    %c0_81 = arith.constant 0 : index
    %c0_82 = arith.constant 0 : index
    %127 = vector.load %arg2[%126, %c0_81, %c0_82] : memref<8x5x128xf32, #tpu.memory_space<vmem>>, vector<1x5x128xf32>
    %128 = vector.shape_cast %127 : vector<1x5x128xf32> to vector<5x128xf32>
    %c5_83 = arith.constant 5 : index
    %c0_84 = arith.constant 0 : index
    %c0_85 = arith.constant 0 : index
    %129 = vector.load %arg6[%c5_83, %c0_84, %c0_85] : memref<8x10x128xf32, #tpu.memory_space<vmem>>, vector<1x5x128xf32>
    %130 = vector.shape_cast %129 : vector<1x5x128xf32> to vector<5x128xf32>
    %131 = vector.shape_cast %128 : vector<5x128xf32> to vector<1x5x128xf32>
    tpu.vector_store %arg6[%c5_83, %c0_84, %c0_85], %131 {strides = array<i32>} : memref<8x10x128xf32, #tpu.memory_space<vmem>>, vector<1x5x128xf32>,
    %c8_i32_86 = arith.constant 8 : i32
    %132 = arith.muli %arg0, %c8_i32_86 : i32
    %c5_i32_87 = arith.constant 5 : i32
    %133 = arith.addi %132, %c5_i32_87 : i32
    %c2_i32_88 = arith.constant 2 : i32
    %134 = arith.muli %133, %c2_i32_88 : i32
    %c1_i32_89 = arith.constant 1 : i32
    %135 = arith.addi %134, %c1_i32_89 : i32
    %136 = arith.index_cast %135 : i32 to index
    %137 = memref.load %arg1[%136] : memref<32xi32, #tpu.memory_space<smem>>
    %138 = arith.index_cast %137 : i32 to index
    %c0_90 = arith.constant 0 : index
    %c0_91 = arith.constant 0 : index
    %139 = vector.load %arg2[%138, %c0_90, %c0_91] : memref<8x5x128xf32, #tpu.memory_space<vmem>>, vector<1x5x128xf32>
    %140 = vector.shape_cast %139 : vector<1x5x128xf32> to vector<5x128xf32>
    %c5_92 = arith.constant 5 : index
    %c5_93 = arith.constant 5 : index
    %c0_94 = arith.constant 0 : index
    %141 = vector.load %arg6[%c5_92, %c5_93, %c0_94] : memref<8x10x128xf32, #tpu.memory_space<vmem>>, vector<1x5x128xf32>
    %142 = vector.shape_cast %141 : vector<1x5x128xf32> to vector<5x128xf32>
    %143 = vector.shape_cast %140 : vector<5x128xf32> to vector<1x5x128xf32>
    tpu.vector_store %arg6[%c5_92, %c5_93, %c0_94], %143 {strides = array<i32>} : memref<8x10x128xf32, #tpu.memory_space<vmem>>, vector<1x5x128xf32>,
    %c8_i32_95 = arith.constant 8 : i32
    %144 = arith.muli %arg0, %c8_i32_95 : i32
    %c6_i32 = arith.constant 6 : i32
    %145 = arith.addi %144, %c6_i32 : i32
    %c2_i32_96 = arith.constant 2 : i32
    %146 = arith.muli %145, %c2_i32_96 : i32
    %c0_i32_97 = arith.constant 0 : i32
    %147 = arith.addi %146, %c0_i32_97 : i32
    %148 = arith.index_cast %147 : i32 to index
    %149 = memref.load %arg1[%148] : memref<32xi32, #tpu.memory_space<smem>>
    %150 = arith.index_cast %149 : i32 to index
    %c0_98 = arith.constant 0 : index
    %c0_99 = arith.constant 0 : index
    %151 = vector.load %arg2[%150, %c0_98, %c0_99] : memref<8x5x128xf32, #tpu.memory_space<vmem>>, vector<1x5x128xf32>
    %152 = vector.shape_cast %151 : vector<1x5x128xf32> to vector<5x128xf32>
    %c6 = arith.constant 6 : index
    %c0_100 = arith.constant 0 : index
    %c0_101 = arith.constant 0 : index
    %153 = vector.load %arg6[%c6, %c0_100, %c0_101] : memref<8x10x128xf32, #tpu.memory_space<vmem>>, vector<1x5x128xf32>
    %154 = vector.shape_cast %153 : vector<1x5x128xf32> to vector<5x128xf32>
    %155 = vector.shape_cast %152 : vector<5x128xf32> to vector<1x5x128xf32>
    tpu.vector_store %arg6[%c6, %c0_100, %c0_101], %155 {strides = array<i32>} : memref<8x10x128xf32, #tpu.memory_space<vmem>>, vector<1x5x128xf32>,
    %c8_i32_102 = arith.constant 8 : i32
    %156 = arith.muli %arg0, %c8_i32_102 : i32
    %c6_i32_103 = arith.constant 6 : i32
    %157 = arith.addi %156, %c6_i32_103 : i32
    %c2_i32_104 = arith.constant 2 : i32
    %158 = arith.muli %157, %c2_i32_104 : i32
    %c1_i32_105 = arith.constant 1 : i32
    %159 = arith.addi %158, %c1_i32_105 : i32
    %160 = arith.index_cast %159 : i32 to index
    %161 = memref.load %arg1[%160] : memref<32xi32, #tpu.memory_space<smem>>
    %162 = arith.index_cast %161 : i32 to index
    %c0_106 = arith.constant 0 : index
    %c0_107 = arith.constant 0 : index
    %163 = vector.load %arg2[%162, %c0_106, %c0_107] : memref<8x5x128xf32, #tpu.memory_space<vmem>>, vector<1x5x128xf32>
    %164 = vector.shape_cast %163 : vector<1x5x128xf32> to vector<5x128xf32>
    %c6_108 = arith.constant 6 : index
    %c5_109 = arith.constant 5 : index
    %c0_110 = arith.constant 0 : index
    %165 = vector.load %arg6[%c6_108, %c5_109, %c0_110] : memref<8x10x128xf32, #tpu.memory_space<vmem>>, vector<1x5x128xf32>
    %166 = vector.shape_cast %165 : vector<1x5x128xf32> to vector<5x128xf32>
    %167 = vector.shape_cast %164 : vector<5x128xf32> to vector<1x5x128xf32>
    tpu.vector_store %arg6[%c6_108, %c5_109, %c0_110], %167 {strides = array<i32>} : memref<8x10x128xf32, #tpu.memory_space<vmem>>, vector<1x5x128xf32>,
    %c8_i32_111 = arith.constant 8 : i32
    %168 = arith.muli %arg0, %c8_i32_111 : i32
    %c7_i32 = arith.constant 7 : i32
    %169 = arith.addi %168, %c7_i32 : i32
    %c2_i32_112 = arith.constant 2 : i32
    %170 = arith.muli %169, %c2_i32_112 : i32
    %c0_i32_113 = arith.constant 0 : i32
    %171 = arith.addi %170, %c0_i32_113 : i32
    %172 = arith.index_cast %171 : i32 to index
    %173 = memref.load %arg1[%172] : memref<32xi32, #tpu.memory_space<smem>>
    %174 = arith.index_cast %173 : i32 to index
    %c0_114 = arith.constant 0 : index
    %c0_115 = arith.constant 0 : index
    %175 = vector.load %arg2[%174, %c0_114, %c0_115] : memref<8x5x128xf32, #tpu.memory_space<vmem>>, vector<1x5x128xf32>
    %176 = vector.shape_cast %175 : vector<1x5x128xf32> to vector<5x128xf32>
    %c7 = arith.constant 7 : index
    %c0_116 = arith.constant 0 : index
    %c0_117 = arith.constant 0 : index
    %177 = vector.load %arg6[%c7, %c0_116, %c0_117] : memref<8x10x128xf32, #tpu.memory_space<vmem>>, vector<1x5x128xf32>
    %178 = vector.shape_cast %177 : vector<1x5x128xf32> to vector<5x128xf32>
    %179 = vector.shape_cast %176 : vector<5x128xf32> to vector<1x5x128xf32>
    tpu.vector_store %arg6[%c7, %c0_116, %c0_117], %179 {strides = array<i32>} : memref<8x10x128xf32, #tpu.memory_space<vmem>>, vector<1x5x128xf32>,
    %c8_i32_118 = arith.constant 8 : i32
    %180 = arith.muli %arg0, %c8_i32_118 : i32
    %c7_i32_119 = arith.constant 7 : i32
    %181 = arith.addi %180, %c7_i32_119 : i32
    %c2_i32_120 = arith.constant 2 : i32
    %182 = arith.muli %181, %c2_i32_120 : i32
    %c1_i32_121 = arith.constant 1 : i32
    %183 = arith.addi %182, %c1_i32_121 : i32
    %184 = arith.index_cast %183 : i32 to index
    %185 = memref.load %arg1[%184] : memref<32xi32, #tpu.memory_space<smem>>
    %186 = arith.index_cast %185 : i32 to index
    %c0_122 = arith.constant 0 : index
    %c0_123 = arith.constant 0 : index
    %187 = vector.load %arg2[%186, %c0_122, %c0_123] : memref<8x5x128xf32, #tpu.memory_space<vmem>>, vector<1x5x128xf32>
    %188 = vector.shape_cast %187 : vector<1x5x128xf32> to vector<5x128xf32>
    %c7_124 = arith.constant 7 : index
    %c5_125 = arith.constant 5 : index
    %c0_126 = arith.constant 0 : index
    %189 = vector.load %arg6[%c7_124, %c5_125, %c0_126] : memref<8x10x128xf32, #tpu.memory_space<vmem>>, vector<1x5x128xf32>
    %190 = vector.shape_cast %189 : vector<1x5x128xf32> to vector<5x128xf32>
    %191 = vector.shape_cast %188 : vector<5x128xf32> to vector<1x5x128xf32>
    tpu.vector_store %arg6[%c7_124, %c5_125, %c0_126], %191 {strides = array<i32>} : memref<8x10x128xf32, #tpu.memory_space<vmem>>, vector<1x5x128xf32>,
    %c8_i32_127 = arith.constant 8 : i32
    %192 = arith.muli %arg0, %c8_i32_127 : i32
    %c0_i32_128 = arith.constant 0 : i32
    %c0_i32_129 = arith.constant 0 : i32
    %c0_i32_130 = arith.constant 0 : i32
    %193 = tpu.memref_slice %arg4[%192, %c0_i32_129, %c0_i32_130] : memref<16x10x128xf32, #tpu.memory_space<any>> -> memref<8x10x128xf32, #tpu.memory_space<any>>
    %194 = tpu.memref_slice %arg7[%c0_i32_128] : memref<2x!tpu.dma_semaphore, #tpu.memory_space<semaphore_mem>> -> memref<1x!tpu.dma_semaphore, #tpu.memory_space<semaphore_mem>>
    %195 = tpu.memref_squeeze %194 : memref<1x!tpu.dma_semaphore, #tpu.memory_space<semaphore_mem>> -> memref<!tpu.dma_semaphore, #tpu.memory_space<semaphore_mem>>
    tpu.enqueue_dma source(%arg6 : memref<8x10x128xf32, #tpu.memory_space<vmem>>) target(%193 : memref<8x10x128xf32, #tpu.memory_space<any>>) target_semaphore(%195 : memref<!tpu.dma_semaphore, #tpu.memory_space<semaphore_mem>>)
    %c1_i32_131 = arith.constant 1 : i32
    %c0_i32_132 = arith.constant 0 : i32
    %c0_i32_133 = arith.constant 0 : i32
    %196 = tpu.memref_slice %arg5[%192, %c0_i32_132, %c0_i32_133] : memref<16x18x128xf32, #tpu.memory_space<any>> -> memref<8x10x128xf32, #tpu.memory_space<any>>
    %197 = tpu.memref_slice %arg7[%c1_i32_131] : memref<2x!tpu.dma_semaphore, #tpu.memory_space<semaphore_mem>> -> memref<1x!tpu.dma_semaphore, #tpu.memory_space<semaphore_mem>>
    %198 = tpu.memref_squeeze %197 : memref<1x!tpu.dma_semaphore, #tpu.memory_space<semaphore_mem>> -> memref<!tpu.dma_semaphore, #tpu.memory_space<semaphore_mem>>
    tpu.enqueue_dma source(%arg6 : memref<8x10x128xf32, #tpu.memory_space<vmem>>) target(%196 : memref<8x10x128xf32, #tpu.memory_space<any>>) target_semaphore(%198 : memref<!tpu.dma_semaphore, #tpu.memory_space<semaphore_mem>>)
    %c0_i32_134 = arith.constant 0 : i32
    %c0_i32_135 = arith.constant 0 : i32
    %c0_i32_136 = arith.constant 0 : i32
    %199 = tpu.memref_slice %arg4[%192, %c0_i32_135, %c0_i32_136] : memref<16x10x128xf32, #tpu.memory_space<any>> -> memref<8x10x128xf32, #tpu.memory_space<any>>
    %200 = tpu.memref_slice %arg7[%c0_i32_134] : memref<2x!tpu.dma_semaphore, #tpu.memory_space<semaphore_mem>> -> memref<1x!tpu.dma_semaphore, #tpu.memory_space<semaphore_mem>>
    %201 = tpu.memref_squeeze %200 : memref<1x!tpu.dma_semaphore, #tpu.memory_space<semaphore_mem>> -> memref<!tpu.dma_semaphore, #tpu.memory_space<semaphore_mem>>
    tpu.wait_dma2 semaphore(%201 : memref<!tpu.dma_semaphore, #tpu.memory_space<semaphore_mem>>) src(%arg6 : memref<8x10x128xf32, #tpu.memory_space<vmem>>) dst(%199 : memref<8x10x128xf32, #tpu.memory_space<any>>)
    %c1_i32_137 = arith.constant 1 : i32
    %c0_i32_138 = arith.constant 0 : i32
    %c0_i32_139 = arith.constant 0 : i32
    %202 = tpu.memref_slice %arg5[%192, %c0_i32_138, %c0_i32_139] : memref<16x18x128xf32, #tpu.memory_space<any>> -> memref<8x10x128xf32, #tpu.memory_space<any>>
    %203 = tpu.memref_slice %arg7[%c1_i32_137] : memref<2x!tpu.dma_semaphore, #tpu.memory_space<semaphore_mem>> -> memref<1x!tpu.dma_semaphore, #tpu.memory_space<semaphore_mem>>
    %204 = tpu.memref_squeeze %203 : memref<1x!tpu.dma_semaphore, #tpu.memory_space<semaphore_mem>> -> memref<!tpu.dma_semaphore, #tpu.memory_space<semaphore_mem>>
    tpu.wait_dma2 semaphore(%204 : memref<!tpu.dma_semaphore, #tpu.memory_space<semaphore_mem>>) src(%arg6 : memref<8x10x128xf32, #tpu.memory_space<vmem>>) dst(%202 : memref<8x10x128xf32, #tpu.memory_space<any>>)
    return
  }
  func.func @transform_0(%arg0: i32) -> i32 {
    %c0_i32 = arith.constant 0 : i32
    %c0_i32_0 = arith.constant 0 : i32
    return %c0_i32 : i32
  }
  func.func @transform_1(%arg0: i32) -> (i32, i32, i32) {
    %c0_i32 = arith.constant 0 : i32
    %c0_i32_0 = arith.constant 0 : i32
    %c0_i32_1 = arith.constant 0 : i32
    %c0_i32_2 = arith.constant 0 : i32
    return %c0_i32, %c0_i32_0, %c0_i32_1 : i32, i32, i32
  }
}

</mosaic_0001>

<llo_original>
// kernel: prompt_forward.2
$region0: #{prompt_forward.2}
  #allocation0 [shape = 'u32[]', space=smem, size = 0x4, offset = 0x4, fixed_abs, tag = 'smem constant byte address 0x4 - core index']
  #allocation1 [shape = 'u32[144,128]{1,0:T(1,128)}', space=vmem, size = 0x12000, scoped, tag = 'internal scratch']
  %s0 = inlined_call_operand.hbm [shape: f32[16,8,128], index: 0, kind: input, shape index: {}]
  %s1 = inlined_call_operand.vmem [shape: f32[8,128], index: 1, kind: input, shape index: {}]
  %s2 = inlined_call_operand.vmem [shape: f32[16,1,8], index: 2, kind: output, shape index: {0}]
  %s3 = inlined_call_operand.hbm [shape: f32[16,1,128], index: 3, kind: output, shape index: {1}]
  %s4 = inlined_call_operand.vmem [shape: f32[16,18,128], index: 4, kind: output, shape index: {2}]
  %5 = xla_tuple %s2, %s3, %s4
  %s6 = sld [smem:[#allocation0]]
  $region61: #{prompt_forward.2} parent=0
    _
  %s8 = ssub.s32 1, %s6
  %s9 = scalar_select 0, %s8, %s6
  $region1: #{prompt_forward.2} parent=0
    #allocation2 [shape = 'u8[65536]{0}', space=vmem, size = 0x10000, scoped, tag = 'input window, operand 0']
    #allocation3 [shape = 's32[2]{0}', space=sflag, size = 0x8, scoped, tag = 'scoped memory for prompt_forward.2']
    #allocation4 [shape = 's32[2]{0}', space=sflag, size = 0x8, scoped, tag = 'scoped memory for prompt_forward.2']
    #allocation5 [shape = 'u8[8192]{0}', space=vmem, size = 0x2000, scoped, tag = 'output window, operand 1']
    %10 = vsyncpa [#allocation3], 0
    %s11 = scalar_lea.sflag [#allocation3], 1
    %12 = vsyncpa %s11, 0
    %13 = vsyncpa [#allocation4], 0
    %s14 = scalar_lea.sflag [#allocation4], 1
    %15 = vsyncpa %s14, 0
    loop: start=0, step=1, limit=4
    $region2: #{prompt_forward.2} parent=1 // loop_pre_header
      _
    $region3: #{prompt_forward.2} parent=1 // loop_header
      %s17 = sphi 0, %s21
      %p18 = scmp.ge.s32.totalorder %s17, 4
      %s27 = sphi 0, %s29
      %s30 = sphi 0, %s27
      %s31 = sphi 0, %s30
      %s47 = sphi 0, %s31
      %s51 = sphi 0, %s51
      %s53 = sphi 0, %s51
      %s54 = sphi 0, %s53
      %s68 = sphi 0, %s54
      %s74 = sphi 0, %s76
      %s77 = sphi 0, %s74
      %s78 = sphi 0, %s77
      %s94 = sphi 0, %s78
      %s100 = sphi 0, %s102
      %s103 = sphi 0, %s100
      %s104 = sphi 0, %s103
      %s120 = sphi 0, %s104
      %s126 = sphi 0, %s128
      %s129 = sphi 0, %s126
      %s130 = sphi 0, %s129
      %s146 = sphi 0, %s130
    $region4: #{prompt_forward.2} parent=1 // loop_header_branch
      %20 = sbr.rel (%p18) target = $region8
    $region5: #{prompt_forward.2} parent=1 // loop_body
      %s22 = ssub.s32 %s17, 1
      %s23 = ssub.s32 %s17, 2
      %s24 = sadd.s32 %s17, 1
      %s25 = ssub.s32 %s17, %s24
      %p26 = scmp.eq.s32.totalorder %s25, 0
      %s28 = sadd.s32 %s27, 1
      %s29 = scalar_select %p26, %s27, %s28
      %p32 = pneg %p26
      %p33 = scmp.eq.s32.totalorder %s17, 1
      %p34 = por %p32, %p33
      %p35 = scmp.ne.s32.totalorder %s27, %s30
      %p36 = scmp.eq.s32.totalorder %s17, 0
      %p37 = por %p35, %p36
      %p38 = scmp.ne.s32.totalorder %s27, %s30
      %p39 = scmp.eq.s32.totalorder %s22, 1
      %p40 = por %p38, %p39
      %p41 = scmp.ne.s32.totalorder %s30, %s31
      %p42 = scmp.eq.s32.totalorder %s22, 0
      %p43 = por %p41, %p42
      %p44 = scmp.ne.s32.totalorder %s30, %s31
      %p45 = scmp.eq.s32.totalorder %s23, 1
      %p46 = por %p44, %p45
      %p48 = scmp.ne.s32.totalorder %s31, %s47
      %p49 = scmp.eq.s32.totalorder %s23, 0
      %p50 = por %p48, %p49
      %s52 = sadd.s32 %s51, 1
      %p55 = scmp.eq.s32.totalorder %s17, 1
      %p56 = scmp.ne.s32.totalorder %s51, %s53
      %p57 = scmp.eq.s32.totalorder %s17, 0
      %p58 = por %p56, %p57
      %p59 = scmp.ne.s32.totalorder %s51, %s53
      %p60 = scmp.eq.s32.totalorder %s22, 1
      %p61 = por %p59, %p60
      %p62 = scmp.ne.s32.totalorder %s53, %s54
      %p63 = scmp.eq.s32.totalorder %s22, 0
      %p64 = por %p62, %p63
      %p65 = scmp.ne.s32.totalorder %s53, %s54
      %p66 = scmp.eq.s32.totalorder %s23, 1
      %p67 = por %p65, %p66
      %p69 = scmp.ne.s32.totalorder %s54, %s68
      %p70 = scmp.eq.s32.totalorder %s23, 0
      %p71 = por %p69, %p70
      %s72 = ssub.s32 %s17, %s24
      %p73 = scmp.eq.s32.totalorder %s72, 0
      %s75 = sadd.s32 %s74, 1
      %s76 = scalar_select %p73, %s74, %s75
      %p79 = pneg %p73
      %p80 = scmp.eq.s32.totalorder %s17, 1
      %p81 = por %p79, %p80
      %p82 = scmp.ne.s32.totalorder %s74, %s77
      %p83 = scmp.eq.s32.totalorder %s17, 0
      %p84 = por %p82, %p83
      %p85 = scmp.ne.s32.totalorder %s74, %s77
      %p86 = scmp.eq.s32.totalorder %s22, 1
      %p87 = por %p85, %p86
      %p88 = scmp.ne.s32.totalorder %s77, %s78
      %p89 = scmp.eq.s32.totalorder %s22, 0
      %p90 = por %p88, %p89
      %p91 = scmp.ne.s32.totalorder %s77, %s78
      %p92 = scmp.eq.s32.totalorder %s23, 1
      %p93 = por %p91, %p92
      %p95 = scmp.ne.s32.totalorder %s78, %s94
      %p96 = scmp.eq.s32.totalorder %s23, 0
      %p97 = por %p95, %p96
      %s98 = ssub.s32 %s17, %s24
      %p99 = scmp.eq.s32.totalorder %s98, 0
      %s101 = sadd.s32 %s100, 1
      %s102 = scalar_select %p99, %s100, %s101
      %p105 = pneg %p99
      %p106 = scmp.eq.s32.totalorder %s17, 1
      %p107 = por %p105, %p106
      %p108 = scmp.ne.s32.totalorder %s100, %s103
      %p109 = scmp.eq.s32.totalorder %s17, 0
      %p110 = por %p108, %p109
      %p111 = scmp.ne.s32.totalorder %s100, %s103
      %p112 = scmp.eq.s32.totalorder %s22, 1
      %p113 = por %p111, %p112
      %p114 = scmp.ne.s32.totalorder %s103, %s104
      %p115 = scmp.eq.s32.totalorder %s22, 0
      %p116 = por %p114, %p115
      %p117 = scmp.ne.s32.totalorder %s103, %s104
      %p118 = scmp.eq.s32.totalorder %s23, 1
      %p119 = por %p117, %p118
      %p121 = scmp.ne.s32.totalorder %s104, %s120
      %p122 = scmp.eq.s32.totalorder %s23, 0
      %p123 = por %p121, %p122
      %s124 = ssub.s32 %s17, %s24
      %p125 = scmp.eq.s32.totalorder %s124, 0
      %s127 = sadd.s32 %s126, 1
      %s128 = scalar_select %p125, %s126, %s127
      %p131 = pneg %p125
      %p132 = scmp.eq.s32.totalorder %s17, 1
      %p133 = por %p131, %p132
      %p134 = scmp.ne.s32.totalorder %s126, %s129
      %p135 = scmp.eq.s32.totalorder %s17, 0
      %p136 = por %p134, %p135
      %p137 = scmp.ne.s32.totalorder %s126, %s129
      %p138 = scmp.eq.s32.totalorder %s22, 1
      %p139 = por %p137, %p138
      %p140 = scmp.ne.s32.totalorder %s129, %s130
      %p141 = scmp.eq.s32.totalorder %s22, 0
      %p142 = por %p140, %p141
      %p143 = scmp.ne.s32.totalorder %s129, %s130
      %p144 = scmp.eq.s32.totalorder %s23, 1
      %p145 = por %p143, %p144
      %p147 = scmp.ne.s32.totalorder %s130, %s146
      %p148 = scmp.eq.s32.totalorder %s23, 0
      %p149 = por %p147, %p148
      %p150 = scmp.le.s32.totalorder 1, %s17
      %p151 = scmp.lt.s32.totalorder %s17, 3
      %p152 = pnand %p150, %p151
      %p153 = pneg %p152
      // Predicated region
      $region9: #{prompt_forward.2} parent=5 // pred_check
        _
      $region10: #{prompt_forward.2} parent=5 // pred_check_branch
        %155 = sbr.rel (%p152) target = $region12
      $region11: #{prompt_forward.2} parent=5 // pred_region
        %s156 = ssub.s32 %s17, 1
        // Predicated region
        $region13: #{prompt_forward.2} parent=11 // pred_check
          %p157 = pneg %p64
        $region14: #{prompt_forward.2} parent=11 // pred_check_branch
          %159 = sbr.rel (%p157) target = $region16
        $region15: #{prompt_forward.2} parent=11 // pred_region
          _
        $region16: #{prompt_forward.2} parent=11 // pred_fallthru
          _
      $region12: #{prompt_forward.2} parent=5 // pred_fallthru
        _
      %p160 = scmp.lt.s32.totalorder %s17, 2
      // Predicated region
      $region17: #{prompt_forward.2} parent=5 // pred_check
        %p161 = pneg %p160
      $region18: #{prompt_forward.2} parent=5 // pred_check_branch
        %163 = sbr.rel (%p161) target = $region20
      $region19: #{prompt_forward.2} parent=5 // pred_region
        // Predicated region
        $region21: #{prompt_forward.2} parent=19 // pred_check
          %p164 = pneg %p37
        $region22: #{prompt_forward.2} parent=19 // pred_check_branch
          %166 = sbr.rel (%p164) target = $region24
        $region23: #{prompt_forward.2} parent=19 // pred_region
          %s167 = sand.u32 %s27, 1
          %s168 = scalar_lea.sflag [#allocation3], %s167
          %s169 = sand.u32 %s27, 1
          %s170 = smul.addr %s169, 64
          %s171 = scalar_lea.vmem [#allocation2], %s170
          %s172 = smul.u32 8, %s17
          %s174 = ssub.s32 1024, 1024
          %175 = vsyncadd %s168, %s174
          %s176 = smul.addr %s172, 128
          %s177 = scalar_lea.hbm %s0, %s176
          %s178 = sshll.u32 %s171, 4
          %s179 = int_to_ptr.vmem [resolvable:$true] %s178
          %184 = dma.hbm_to_vmem [thread:$0]  %s177, 1024, %s179, %s168, 128, 128, 8
        $region24: #{prompt_forward.2} parent=19 // pred_fallthru
          _
      $region20: #{prompt_forward.2} parent=5 // pred_fallthru
        _
      %p185 = scmp.le.s32.totalorder 1, %s17
      %p186 = scmp.lt.s32.totalorder %s17, 3
      %p187 = pnand %p185, %p186
      %p188 = pneg %p187
      // Predicated region
      $region25: #{prompt_forward.2} parent=5 // pred_check
        _
      $region26: #{prompt_forward.2} parent=5 // pred_check_branch
        %190 = sbr.rel (%p187) target = $region28
      $region27: #{prompt_forward.2} parent=5 // pred_region
        %s191 = ssub.s32 %s17, 1
        %s192 = sand.u32 %s30, 1
        %s193 = scalar_lea.sflag [#allocation3], %s192
        %s194 = sand.u32 %s30, 1
        %s195 = smul.addr %s194, 64
        %s196 = scalar_lea.vmem [#allocation2], %s195
        // Predicated region
        $region29: #{prompt_forward.2} parent=27 // pred_check
          %p197 = pneg %p43
        $region30: #{prompt_forward.2} parent=27 // pred_check_branch
          %199 = sbr.rel (%p197) target = $region32
        $region31: #{prompt_forward.2} parent=27 // pred_region
          %200 = dma.done %s193, 1024
        $region32: #{prompt_forward.2} parent=27 // pred_fallthru
          _
        %s201 = sand.u32 %s30, 1
        %s202 = scalar_lea.sflag [#allocation3], %s201
        %s203 = sand.u32 %s30, 1
        %s204 = smul.addr %s203, 64
        %s205 = scalar_lea.vmem [#allocation2], %s204
        %p206 = pneg %p43
        %p207 = pneg %p40
        %p208 = pneg %p64
        %p209 = pneg %p61
        %p210 = pneg %p90
        %p211 = pneg %p87
        %s212 = smul.u32 8, %s22
        %p213 = scmp.lt.s32.totalorder %s212, 15
        %s214 = scalar_select %p213, %s212, 15
        %s215 = scalar_lea.vmem %s2, %s214
        %p216 = pneg %p116
        %p217 = pneg %p113
        %s218 = sand.u32 %s103, 1
        %s219 = scalar_lea.sflag [#allocation4], %s218
        %s220 = sand.u32 %s103, 1
        %s221 = smul.addr %s220, 8
        %s222 = scalar_lea.vmem [#allocation5], %s221
        %p223 = pneg %p142
        %p224 = pneg %p139
        %s225 = smul.u32 8, %s22
        %p226 = scmp.lt.s32.totalorder %s225, 15
        %s227 = scalar_select %p226, %s225, 15
        %s228 = smul.addr %s227, 3
        %s229 = smul.addr %s228, 8
        %s230 = scalar_lea.vmem %s4, %s229
        %s231 = smul.u32 8, %s22
        %s232 = smul.u32 8, %s22
        %p233 = scmp.lt.s32.totalorder %s232, 15
        %s234 = scalar_select %p233, %s232, 15
        %s235 = scalar_lea.vmem %s2, %s234
        %s236 = smul.u32 8, %s22
        %s237 = smul.u32 8, %s22
        %s238 = smul.u32 8, %s22
        %p239 = scmp.lt.s32.totalorder %s238, 15
        %s240 = scalar_select %p239, %s238, 15
        %s241 = smul.addr %s240, 3
        %s242 = smul.addr %s241, 8
        %s243 = scalar_lea.vmem %s4, %s242
        %s244 = smul.u32 8, %s22
        %v245 = vld [vmem:[%s196] sm:$0xff]
        %v246 = vld [vmem:[%s196 + $0x8] sm:$0xff]
        %v247 = vld [vmem:[%s196 + $0x10] sm:$0xff]
        %v248 = vld [vmem:[%s196 + $0x18] sm:$0xff]
        %v249 = vld [vmem:[%s196 + $0x20] sm:$0xff]
        %v250 = vld [vmem:[%s196 + $0x28] sm:$0xff]
        %v251 = vld [vmem:[%s196 + $0x30] sm:$0xff]
        %v252 = vld [vmem:[%s196 + $0x38] sm:$0xff]
        %253 = vst [vmem:[%s243 + $0xa] sm:$0xff] %v245
        %254 = vst [vmem:[%s243 + $0x22] sm:$0xff] %v246
        %255 = vst [vmem:[%s243 + $0x3a] sm:$0xff] %v247
        %256 = vst [vmem:[%s243 + $0x52] sm:$0xff] %v248
        %257 = vst [vmem:[%s243 + $0x6a] sm:$0xff] %v249
        %258 = vst [vmem:[%s243 + $0x82] sm:$0xff] %v250
        %259 = vst [vmem:[%s243 + $0x9a] sm:$0xff] %v251
        %260 = vst [vmem:[%s243 + $0xb2] sm:$0xff] %v252
        %v261 = vrot.slane %v245, 4
        %v262 = vadd.f32 %v245, %v261
        %v263 = vrot.slane %v262, 2
        %v264 = vadd.f32 %v262, %v263
        %v265 = vrot.slane %v264, 1
        %v266 = vadd.f32 %v264, %v265
        %v267 = vrot.slane %v246, 4
        %v268 = vadd.f32 %v246, %v267
        %v269 = vrot.slane %v268, 2
        %v270 = vadd.f32 %v268, %v269
        %v271 = vrot.slane %v270, 1
        %v272 = vadd.f32 %v270, %v271
        %v273 = vrot.slane %v247, 4
        %v274 = vadd.f32 %v247, %v273
        %v275 = vrot.slane %v274, 2
        %v276 = vadd.f32 %v274, %v275
        %v277 = vrot.slane %v276, 1
        %v278 = vadd.f32 %v276, %v277
        %v279 = vrot.slane %v248, 4
        %v280 = vadd.f32 %v248, %v279
        %v281 = vrot.slane %v280, 2
        %v282 = vadd.f32 %v280, %v281
        %v283 = vrot.slane %v282, 1
        %v284 = vadd.f32 %v282, %v283
        %v285 = vrot.slane %v249, 4
        %v286 = vadd.f32 %v249, %v285
        %v287 = vrot.slane %v286, 2
        %v288 = vadd.f32 %v286, %v287
        %v289 = vrot.slane %v288, 1
        %v290 = vadd.f32 %v288, %v289
        %v291 = vrot.slane %v250, 4
        %v292 = vadd.f32 %v250, %v291
        %v293 = vrot.slane %v292, 2
        %v294 = vadd.f32 %v292, %v293
        %v295 = vrot.slane %v294, 1
        %v296 = vadd.f32 %v294, %v295
        %v297 = vrot.slane %v251, 4
        %v298 = vadd.f32 %v251, %v297
        %v299 = vrot.slane %v298, 2
        %v300 = vadd.f32 %v298, %v299
        %v301 = vrot.slane %v300, 1
        %v302 = vadd.f32 %v300, %v301
        %v303 = vrot.slane %v252, 4
        %v304 = vadd.f32 %v252, %v303
        %v305 = vrot.slane %v304, 2
        %v306 = vadd.f32 %v304, %v305
        %v307 = vrot.slane %v306, 1
        %v308 = vadd.f32 %v306, %v307
        %v309 = vmul.f32 %v266, %v266
        %v310 = vmul.f32 %v272, %v272
        %v311 = vmul.f32 %v278, %v278
        %v312 = vmul.f32 %v284, %v284
        %v313 = vmul.f32 %v290, %v290
        %v314 = vmul.f32 %v296, %v296
        %v315 = vmul.f32 %v302, %v302
        %v316 = vmul.f32 %v308, %v308
        %vm325 = vcmask 1041409
        %v326 = vsel %vm325, %v310, %v309
        %vm327 = vcmask 1042434
        %v328 = vsel %vm327, %v311, %v326
        %vm329 = vcmask 1043459
        %v330 = vsel %vm329, %v312, %v328
        %vm331 = vcmask 1044484
        %v332 = vsel %vm331, %v313, %v330
        %vm333 = vcmask 1045509
        %v334 = vsel %vm333, %v314, %v332
        %vm335 = vcmask 1046534
        %v336 = vsel %vm335, %v315, %v334
        %vm337 = vcmask 1047559
        %v338 = vsel %vm337, %v316, %v336
        %340 = vadd.xlane.f32.xlu0 %v338
        %v341 = vpop.xlane.xlu0 %340
        %v342 = vmax.f32 %v341, 6.4e-11
        %v343 = vrsqrt.pop %v342
        %v345 = vrot.slane %v343, 1
        %v346 = vrot.slane %v343, 2
        %v347 = vrot.slane %v343, 3
        %v348 = vrot.slane %v343, 4
        %v349 = vrot.slane %v343, 5
        %v350 = vrot.slane %v343, 6
        %v351 = vrot.slane %v343, 7
        %v360 = vmul.f32 %v266, %v343
        %v361 = vmul.f32 %v272, %v345
        %v362 = vmul.f32 %v278, %v346
        %v363 = vmul.f32 %v284, %v347
        %v364 = vmul.f32 %v290, %v348
        %v365 = vmul.f32 %v296, %v349
        %v366 = vmul.f32 %v302, %v350
        %v367 = vmul.f32 %v308, %v351
        %v368 = vld [vmem:[%s1] sm:$0xff]
        %v377 = vrot.slane %v361, 7
        %v378 = vsel %vm325, %v377, %v360
        %v379 = vrot.slane %v362, 6
        %v380 = vsel %vm327, %v379, %v378
        %v381 = vrot.slane %v363, 5
        %v382 = vsel %vm329, %v381, %v380
        %v383 = vrot.slane %v364, 4
        %v384 = vsel %vm331, %v383, %v382
        %v385 = vrot.slane %v365, 3
        %v386 = vsel %vm333, %v385, %v384
        %v387 = vrot.slane %v366, 2
        %v388 = vsel %vm335, %v387, %v386
        %v389 = vrot.slane %v367, 1
        %v390 = vsel %vm337, %v389, %v388
        %392 = vmatprep.subr.mxu0 0.0
        %393 = vmatpush1.xpose.msra.mxu0 0.0
        %394 = vmatprep.subr.mxu0 0.0
        %395 = vmatpush1.xpose.msra.mxu0 0.0
        %396 = vmatprep.subr.mxu0 0.0
        %397 = vmatpush1.xpose.msra.mxu0 0.0
        %398 = vmatprep.subr.mxu0 0.0
        %399 = vmatpush1.xpose.msra.mxu0 0.0
        %400 = vmatprep.subr.mxu0 0.0
        %401 = vmatpush1.xpose.msra.mxu0 0.0
        %402 = vmatprep.subr.mxu0 0.0
        %403 = vmatpush1.xpose.msra.mxu0 0.0
        %404 = vmatprep.subr.mxu0 0.0
        %405 = vmatpush1.xpose.msra.mxu0 0.0
        %406 = vmatprep.subr.mxu0 0.0
        %407 = vmatpush1.xpose.msra.mxu0 0.0
        %408 = vmatprep.subr.mxu0 0.0
        %409 = vmatpush1.xpose.msra.mxu0 0.0
        %410 = vmatprep.subr.mxu0 0.0
        %411 = vmatpush1.xpose.msra.mxu0 0.0
        %412 = vmatprep.subr.mxu0 0.0
        %413 = vmatpush1.xpose.msra.mxu0 0.0
        %414 = vmatprep.subr.mxu0 0.0
        %415 = vmatpush1.xpose.msra.mxu0 0.0
        %416 = vmatprep.subr.mxu0 0.0
        %417 = vmatpush1.xpose.msra.mxu0 0.0
        %418 = vmatprep.subr.mxu0 0.0
        %419 = vmatpush1.xpose.msra.mxu0 0.0
        %420 = vmatprep.subr.mxu0 0.0
        %421 = vmatpush1.xpose.msra.mxu0 0.0
        %422 = vmatprep.subr.mxu0 0.0
        %423 = vmatpush1.xpose.msra.mxu0 %v368
        %424 = vmatprep.subr.mxu0 0.0
        %425 = vmatpush2.xpose.msra.mxu0 0.0
        %426 = vmatprep.subr.mxu0 0.0
        %427 = vmatpush2.xpose.msra.mxu0 0.0
        %428 = vmatprep.subr.mxu0 0.0
        %429 = vmatpush2.xpose.msra.mxu0 0.0
        %430 = vmatprep.subr.mxu0 0.0
        %431 = vmatpush2.xpose.msra.mxu0 0.0
        %432 = vmatprep.subr.mxu0 0.0
        %433 = vmatpush2.xpose.msra.mxu0 0.0
        %434 = vmatprep.subr.mxu0 0.0
        %435 = vmatpush2.xpose.msra.mxu0 0.0
        %436 = vmatprep.subr.mxu0 0.0
        %437 = vmatpush2.xpose.msra.mxu0 0.0
        %438 = vmatprep.subr.mxu0 0.0
        %439 = vmatpush2.xpose.msra.mxu0 0.0
        %440 = vmatprep.subr.mxu0 0.0
        %441 = vmatpush2.xpose.msra.mxu0 0.0
        %442 = vmatprep.subr.mxu0 0.0
        %443 = vmatpush2.xpose.msra.mxu0 0.0
        %444 = vmatprep.subr.mxu0 0.0
        %445 = vmatpush2.xpose.msra.mxu0 0.0
        %446 = vmatprep.subr.mxu0 0.0
        %447 = vmatpush2.xpose.msra.mxu0 0.0
        %448 = vmatprep.subr.mxu0 0.0
        %449 = vmatpush2.xpose.msra.mxu0 0.0
        %450 = vmatprep.subr.mxu0 0.0
        %451 = vmatpush2.xpose.msra.mxu0 0.0
        %452 = vmatprep.subr.mxu0 0.0
        %453 = vmatpush2.xpose.msra.mxu0 0.0
        %454 = vmatprep.subr.mxu0 0.0
        %455 = vmatpush2.xpose.msra.mxu0 0.0
        %456 = vmatprep.mubr.f32.mxu0 0.0
        %457 = vmatmul.mubr.f32.gmra.mxu0 %v390
        %v458 = vpop.f32.mrf.mxu0
        %v459 = vadd.f32 0.0, %v458
        %v460 = vpop.f32.mrf.mxu0
        %461 = vdwg.mxu0
        %v463 = vcombine.high %v459, %v459
        %v465 = vunpack.c.l.s4 1966171168
        %v466 = vunpack.c.0.s8 %v465
        %v467 = vlaneseq
        %v468 = vshrl.u32 %v467, 7
        %v469 = vsub.s32 %v466, %v468
        %v470 = vrot.slane %v459, %v469
        %v472 = vunpack.c.l.s4 1966171168
        %v473 = vunpack.c.0.s8 %v472
        %v474 = vlaneseq
        %v475 = vshrl.u32 %v474, 7
        %v476 = vsub.s32 %v473, %v475
        %v477 = vrot.slane %v463, %v476
        %v478 = vcombine.high %v470, %v470
        %v479 = vcombine.high %v477, %v477
        %v481 = vunpack.c.l.s4 1966171168
        %v482 = vunpack.c.0.s8 %v481
        %v483 = vlaneseq
        %v484 = vshrl.u32 %v483, 7
        %v485 = vsub.s32 %v482, %v484
        %v486 = vrot.slane %v470, %v485
        %v488 = vunpack.c.l.s4 1966171168
        %v489 = vunpack.c.0.s8 %v488
        %v490 = vlaneseq
        %v491 = vshrl.u32 %v490, 7
        %v492 = vsub.s32 %v489, %v491
        %v493 = vrot.slane %v477, %v492
        %v495 = vunpack.c.l.s4 1966171168
        %v496 = vunpack.c.0.s8 %v495
        %v497 = vlaneseq
        %v498 = vshrl.u32 %v497, 7
        %v499 = vsub.s32 %v496, %v498
        %v500 = vrot.slane %v478, %v499
        %v502 = vunpack.c.l.s4 1966171168
        %v503 = vunpack.c.0.s8 %v502
        %v504 = vlaneseq
        %v505 = vshrl.u32 %v504, 7
        %v506 = vsub.s32 %v503, %v505
        %v507 = vrot.slane %v479, %v506
        %v508 = vcombine.high %v486, %v486
        %v509 = vcombine.high %v493, %v493
        %v510 = vcombine.high %v500, %v500
        %v511 = vcombine.high %v507, %v507
        %vm520 = vcmask 57344
        %521 = vst.msk [vmem:[%s235] sm:$0x1] %vm520, %v486
        %522 = vst.msk [vmem:[%s235 + $0x1] sm:$0x1] %vm520, %v500
        %523 = vst.msk [vmem:[%s235 + $0x2] sm:$0x1] %vm520, %v508
        %524 = vst.msk [vmem:[%s235 + $0x3] sm:$0x1] %vm520, %v510
        %525 = vst.msk [vmem:[%s235 + $0x4] sm:$0x1] %vm520, %v493
        %526 = vst.msk [vmem:[%s235 + $0x5] sm:$0x1] %vm520, %v507
        %527 = vst.msk [vmem:[%s235 + $0x6] sm:$0x1] %vm520, %v509
        %528 = vst.msk [vmem:[%s235 + $0x7] sm:$0x1] %vm520, %v511
        %529 = vst [vmem:[%s222] sm:$0x1] %v360
        %530 = vst [vmem:[%s222 + $0x1] sm:$0x1] %v361
        %531 = vst [vmem:[%s222 + $0x2] sm:$0x1] %v362
        %532 = vst [vmem:[%s222 + $0x3] sm:$0x1] %v363
        %533 = vst [vmem:[%s222 + $0x4] sm:$0x1] %v364
        %534 = vst [vmem:[%s222 + $0x5] sm:$0x1] %v365
        %535 = vst [vmem:[%s222 + $0x6] sm:$0x1] %v366
        %536 = vst [vmem:[%s222 + $0x7] sm:$0x1] %v367
        %s537 = smul.u32 8, %s22
        %p538 = scmp.lt.s32.totalorder %s537, 15
        %s539 = scalar_select %p538, %s537, 15
        %s540 = scalar_lea.vmem %s2, %s539
        %s541 = sand.u32 %s103, 1
        %s542 = scalar_lea.sflag [#allocation4], %s541
        %s543 = sand.u32 %s103, 1
        %s544 = smul.addr %s543, 8
        %s545 = scalar_lea.vmem [#allocation5], %s544
        %s546 = smul.u32 8, %s22
        %p547 = scmp.lt.s32.totalorder %s546, 15
        %s548 = scalar_select %p547, %s546, 15
        %s549 = smul.addr %s548, 3
        %s550 = smul.addr %s549, 8
        %s551 = scalar_lea.vmem %s4, %s550
        // Predicated region
        $region33: #{prompt_forward.2} parent=27 // pred_check
          %p552 = pneg %p87
        $region34: #{prompt_forward.2} parent=27 // pred_check_branch
          %554 = sbr.rel (%p552) target = $region36
        $region35: #{prompt_forward.2} parent=27 // pred_region
          %s555 = smul.u32 8, %s22
        $region36: #{prompt_forward.2} parent=27 // pred_fallthru
          _
        // Predicated region
        $region37: #{prompt_forward.2} parent=27 // pred_check
          %p556 = pneg %p113
        $region38: #{prompt_forward.2} parent=27 // pred_check_branch
          %558 = sbr.rel (%p556) target = $region40
        $region39: #{prompt_forward.2} parent=27 // pred_region
          %s559 = smul.u32 8, %s22
          %s561 = ssub.s32 128, 128
          %562 = vsyncadd %s542, %s561
          %s563 = smul.addr %s559, 16
          %s564 = scalar_lea.hbm %s3, %s563
          %s565 = sshll.u32 %s545, 4
          %s566 = int_to_ptr.vmem [resolvable:$true] %s565
          %571 = dma.vmem_to_hbm [thread:$0]  %s566, 128, %s564, %s542, 16, 16, 1
        $region40: #{prompt_forward.2} parent=27 // pred_fallthru
          _
        // Predicated region
        $region41: #{prompt_forward.2} parent=27 // pred_check
          %p572 = pneg %p139
        $region42: #{prompt_forward.2} parent=27 // pred_check_branch
          %574 = sbr.rel (%p572) target = $region44
        $region43: #{prompt_forward.2} parent=27 // pred_region
          %s575 = smul.u32 8, %s22
        $region44: #{prompt_forward.2} parent=27 // pred_fallthru
          _
      $region28: #{prompt_forward.2} parent=5 // pred_fallthru
        _
      %p576 = scmp.le.s32.totalorder 2, %s17
      // Predicated region
      $region45: #{prompt_forward.2} parent=5 // pred_check
        %p577 = pneg %p576
      $region46: #{prompt_forward.2} parent=5 // pred_check_branch
        %579 = sbr.rel (%p577) target = $region48
      $region47: #{prompt_forward.2} parent=5 // pred_region
        %s580 = ssub.s32 %s17, 2
        // Predicated region
        $region49: #{prompt_forward.2} parent=47 // pred_check
          %p581 = pneg %p93
        $region50: #{prompt_forward.2} parent=47 // pred_check_branch
          %583 = sbr.rel (%p581) target = $region52
        $region51: #{prompt_forward.2} parent=47 // pred_region
          %s584 = smul.u32 8, %s23
          %p585 = scmp.lt.s32.totalorder %s584, 15
          %s586 = scalar_select %p585, %s584, 15
          %s587 = scalar_lea.vmem %s2, %s586
        $region52: #{prompt_forward.2} parent=47 // pred_fallthru
          _
        // Predicated region
        $region53: #{prompt_forward.2} parent=47 // pred_check
          %p588 = pneg %p119
        $region54: #{prompt_forward.2} parent=47 // pred_check_branch
          %590 = sbr.rel (%p588) target = $region56
        $region55: #{prompt_forward.2} parent=47 // pred_region
          %s591 = sand.u32 %s104, 1
          %s592 = scalar_lea.sflag [#allocation4], %s591
          %s593 = sand.u32 %s104, 1
          %s594 = smul.addr %s593, 8
          %s595 = scalar_lea.vmem [#allocation5], %s594
          %596 = dma.done %s592, 128
        $region56: #{prompt_forward.2} parent=47 // pred_fallthru
          _
        // Predicated region
        $region57: #{prompt_forward.2} parent=47 // pred_check
          %p597 = pneg %p145
        $region58: #{prompt_forward.2} parent=47 // pred_check_branch
          %599 = sbr.rel (%p597) target = $region60
        $region59: #{prompt_forward.2} parent=47 // pred_region
          %s600 = smul.u32 8, %s23
          %p601 = scmp.lt.s32.totalorder %s600, 15
          %s602 = scalar_select %p601, %s600, 15
          %s603 = smul.addr %s602, 3
          %s604 = smul.addr %s603, 8
          %s605 = scalar_lea.vmem %s4, %s604
        $region60: #{prompt_forward.2} parent=47 // pred_fallthru
          _
      $region48: #{prompt_forward.2} parent=5 // pred_fallthru
        _
    $region6: #{prompt_forward.2} parent=1 // loop_footer
      %s21 = sadd.s32 1, %s17
    $region7: #{prompt_forward.2} parent=1 // loop_footer_branch
      %16 = sbr.rel target = $region3
    $region8: #{prompt_forward.2} parent=1 // loop_exit
      _
    %606 = vsyncpa [#allocation3], 1
    %s607 = scalar_lea.sflag [#allocation3], 1
    %608 = vsyncpa %s607, 1
    %609 = vsyncpa [#allocation4], 1
    %s610 = scalar_lea.sflag [#allocation4], 1
    %611 = vsyncpa %s610, 1

// kernel: prompt_forward.3
$region0: #{prompt_forward.3}
  #allocation0 [shape = 'u32[]', space=smem, size = 0x4, offset = 0x4, fixed_abs, tag = 'smem constant byte address 0x4 - core index']
  #allocation1 [shape = 'u32[144,128]{1,0:T(1,128)}', space=vmem, size = 0x12000, scoped, tag = 'internal scratch']
  #allocation2 [shape = 'f32[8,10,128]{2,1,0:T(8,128)}', space=vmem, size = 0x10000, scoped, tag = 'scratch operand']
  #allocation3 [shape = 's32[2]{0}', space=sflag, size = 0x8, scoped, tag = 'scratch operand']
  #allocation6 [shape = 's32[]', space=sflag, size = 0x4, offset = 0, fixed_abs, tag = 'sflag constant byte address 0x0 - dummy sync flag']
  #allocation7 [shape = 's32[]', space=sflag, size = 0x4, offset = 0, fixed_abs, tag = 'sflag constant byte address 0x0 - dummy sync flag']
  %s0 = inlined_call_operand.vmem [shape: s32[32], index: 0, kind: input, shape index: {}]
  %s1 = inlined_call_operand.vmem [shape: f32[8,5,128], index: 1, kind: input, shape index: {}]
  %s2 = inlined_call_operand.vmem [shape: f32[16,18,128], index: 2, kind: input, shape index: {}, may-alias: {2,4}]
  %s3 = inlined_call_operand.vmem [shape: f32[16,10,128], index: 3, kind: output, shape index: {0}]
  %s4 = inlined_call_operand.vmem [shape: f32[16,18,128], index: 4, kind: output, shape index: {1}, may-alias: {2,4}]
  %5 = xla_tuple %s3, %s4
  %s6 = sld [smem:[#allocation0]]
  $region107: #{prompt_forward.3} parent=0
    _
  %s8 = ssub.s32 1, %s6
  %s9 = scalar_select 0, %s8, %s6
  $region1: #{prompt_forward.3} parent=0
    #allocation4 [shape = 'u8[512]{0}', space=smem, size = 0x200, scoped, tag = 'input window, operand 0, single buffered']
    #allocation5 [shape = 's32[2]{0}', space=sflag, size = 0x8, scoped, tag = 'scoped memory for prompt_forward.3']
    %10 = vsyncpa [#allocation5], 0
    loop: start=0, step=1, limit=3
    $region2: #{prompt_forward.3} parent=1 // loop_pre_header
      _
    $region3: #{prompt_forward.3} parent=1 // loop_header
      %s12 = sphi 0, %s16
      %p13 = scmp.ge.s32.totalorder %s12, 3
      %s19 = sphi 0, %s19
      %s21 = sphi 0, %s19
      %s29 = sphi 0, %s21
      %s33 = sphi 0, %s33
      %s35 = sphi 0, %s33
      %s43 = sphi 0, %s35
    $region4: #{prompt_forward.3} parent=1 // loop_header_branch
      %15 = sbr.rel (%p13) target = $region8
    $region5: #{prompt_forward.3} parent=1 // loop_body
      %s17 = ssub.s32 %s12, 1
      %s18 = sadd.s32 %s12, 1
      %s20 = sadd.s32 %s19, 1
      %p22 = scmp.eq.s32.totalorder %s12, 1
      %p23 = scmp.ne.s32.totalorder %s19, %s21
      %p24 = scmp.eq.s32.totalorder %s12, 0
      %p25 = por %p23, %p24
      %p26 = scmp.ne.s32.totalorder %s19, %s21
      %p27 = scmp.eq.s32.totalorder %s17, 1
      %p28 = por %p26, %p27
      %p30 = scmp.ne.s32.totalorder %s21, %s29
      %p31 = scmp.eq.s32.totalorder %s17, 0
      %p32 = por %p30, %p31
      %s34 = sadd.s32 %s33, 1
      %p36 = scmp.eq.s32.totalorder %s12, 1
      %p37 = scmp.ne.s32.totalorder %s33, %s35
      %p38 = scmp.eq.s32.totalorder %s12, 0
      %p39 = por %p37, %p38
      %p40 = scmp.ne.s32.totalorder %s33, %s35
      %p41 = scmp.eq.s32.totalorder %s17, 1
      %p42 = por %p40, %p41
      %p44 = scmp.ne.s32.totalorder %s35, %s43
      %p45 = scmp.eq.s32.totalorder %s17, 0
      %p46 = por %p44, %p45
      %p47 = scmp.le.s32.totalorder 1, %s12
      // Predicated region
      $region9: #{prompt_forward.3} parent=5 // pred_check
        %p48 = pneg %p47
      $region10: #{prompt_forward.3} parent=5 // pred_check_branch
        %50 = sbr.rel (%p48) target = $region12
      $region11: #{prompt_forward.3} parent=5 // pred_region
        %s51 = ssub.s32 %s12, 1
        // Predicated region
        $region13: #{prompt_forward.3} parent=11 // pred_check
          %p52 = pneg %p32
        $region14: #{prompt_forward.3} parent=11 // pred_check_branch
          %54 = sbr.rel (%p52) target = $region16
        $region15: #{prompt_forward.3} parent=11 // pred_region
          %s56 = ssub.s32 16, 16
          %57 = vsyncadd [#allocation5], %s56
          %s59 = sshll.u32 %s0, 4
          %s60 = int_to_ptr.vmem [resolvable:$true] %s59
          %62 = dma.vmem_to_smem %s60, 16, [#allocation4], [#allocation5]
        $region16: #{prompt_forward.3} parent=11 // pred_fallthru
          _
        // Predicated region
        $region17: #{prompt_forward.3} parent=11 // pred_check
          %p63 = pneg %p46
        $region18: #{prompt_forward.3} parent=11 // pred_check_branch
          %65 = sbr.rel (%p63) target = $region20
        $region19: #{prompt_forward.3} parent=11 // pred_region
          _
        $region20: #{prompt_forward.3} parent=11 // pred_fallthru
          _
      $region12: #{prompt_forward.3} parent=5 // pred_fallthru
        _
      %p66 = scmp.lt.s32.totalorder %s12, 2
      // Predicated region
      $region21: #{prompt_forward.3} parent=5 // pred_check
        %p67 = pneg %p66
      $region22: #{prompt_forward.3} parent=5 // pred_check_branch
        %69 = sbr.rel (%p67) target = $region24
      $region23: #{prompt_forward.3} parent=5 // pred_region
        _
      $region24: #{prompt_forward.3} parent=5 // pred_fallthru
        _
      %p70 = scmp.le.s32.totalorder 1, %s12
      // Predicated region
      $region25: #{prompt_forward.3} parent=5 // pred_check
        %p71 = pneg %p70
      $region26: #{prompt_forward.3} parent=5 // pred_check_branch
        %73 = sbr.rel (%p71) target = $region28
      $region27: #{prompt_forward.3} parent=5 // pred_region
        %s74 = ssub.s32 %s12, 1
        // Predicated region
        $region29: #{prompt_forward.3} parent=27 // pred_check
          %p75 = pneg %p32
        $region30: #{prompt_forward.3} parent=27 // pred_check_branch
          %77 = sbr.rel (%p75) target = $region32
        $region31: #{prompt_forward.3} parent=27 // pred_region
          %78 = dma.done [#allocation5], 16
        $region32: #{prompt_forward.3} parent=27 // pred_fallthru
          _
        %79 = sfence
        %p80 = pneg %p32
        %p81 = pneg %p28
        %p82 = pneg %p46
        %p83 = pneg %p42
        %s84 = smul.u32 %s17, 16
        %s85 = sld [smem:[#allocation4 + %s84]]
        %s86 = smul.u32 %s85, 8
        %s87 = scalar_lea.vmem %s1, %s86
        %v88 = vld [vmem:[%s87] sm:$0x1f]
        %89 = vst [vmem:[#allocation2] sm:$0x1f] %v88
        %s90 = sadd.s32 %s84, 1
        %s91 = sld [smem:[#allocation4 + %s90]]
        %s92 = smul.u32 %s91, 8
        %s93 = scalar_lea.vmem %s1, %s92
        %v94 = vld [vmem:[%s93] sm:$0x1f]
        %95 = vst [vmem:[#allocation2 + $0x5] sm:$0x1f] %v94
        %s96 = smul.u32 %s17, 8
        %s97 = sadd.s32 %s96, 1
        %s98 = smul.u32 %s97, 2
        %s99 = sld [smem:[#allocation4 + %s98]]
        %s100 = smul.u32 %s99, 8
        %s101 = scalar_lea.vmem %s1, %s100
        %v102 = vld [vmem:[%s101] sm:$0x1f]
        %s103 = scalar_lea.vmem [#allocation2], 16
        %104 = vst [vmem:[%s103] sm:$0x1f] %v102
        %s105 = sadd.s32 %s98, 1
        %s106 = sld [smem:[#allocation4 + %s105]]
        %s107 = smul.u32 %s106, 8
        %s108 = scalar_lea.vmem %s1, %s107
        %v109 = vld [vmem:[%s108] sm:$0x1f]
        %110 = vst [vmem:[%s103 + $0x5] sm:$0x1f] %v109
        %s111 = sadd.s32 %s96, 2
        %s112 = smul.u32 %s111, 2
        %s113 = sld [smem:[#allocation4 + %s112]]
        %s114 = smul.u32 %s113, 8
        %s115 = scalar_lea.vmem %s1, %s114
        %v116 = vld [vmem:[%s115] sm:$0x1f]
        %s117 = scalar_lea.vmem [#allocation2], 32
        %118 = vst [vmem:[%s117] sm:$0x1f] %v116
        %s119 = sadd.s32 %s112, 1
        %s120 = sld [smem:[#allocation4 + %s119]]
        %s121 = smul.u32 %s120, 8
        %s122 = scalar_lea.vmem %s1, %s121
        %v123 = vld [vmem:[%s122] sm:$0x1f]
        %124 = vst [vmem:[%s117 + $0x5] sm:$0x1f] %v123
        %s125 = sadd.s32 %s96, 3
        %s126 = smul.u32 %s125, 2
        %s127 = sld [smem:[#allocation4 + %s126]]
        %s128 = smul.u32 %s127, 8
        %s129 = scalar_lea.vmem %s1, %s128
        %v130 = vld [vmem:[%s129] sm:$0x1f]
        %s131 = scalar_lea.vmem [#allocation2], 48
        %132 = vst [vmem:[%s131] sm:$0x1f] %v130
        %s133 = sadd.s32 %s126, 1
        %s134 = sld [smem:[#allocation4 + %s133]]
        %s135 = smul.u32 %s134, 8
        %s136 = scalar_lea.vmem %s1, %s135
        %v137 = vld [vmem:[%s136] sm:$0x1f]
        %138 = vst [vmem:[%s131 + $0x5] sm:$0x1f] %v137
        %s139 = sadd.s32 %s96, 4
        %s140 = smul.u32 %s139, 2
        %s141 = sld [smem:[#allocation4 + %s140]]
        %s142 = smul.u32 %s141, 8
        %s143 = scalar_lea.vmem %s1, %s142
        %v144 = vld [vmem:[%s143] sm:$0x1f]
        %s145 = scalar_lea.vmem [#allocation2], 64
        %146 = vst [vmem:[%s145] sm:$0x1f] %v144
        %s147 = sadd.s32 %s140, 1
        %s148 = sld [smem:[#allocation4 + %s147]]
        %s149 = smul.u32 %s148, 8
        %s150 = scalar_lea.vmem %s1, %s149
        %v151 = vld [vmem:[%s150] sm:$0x1f]
        %152 = vst [vmem:[%s145 + $0x5] sm:$0x1f] %v151
        %s153 = sadd.s32 %s96, 5
        %s154 = smul.u32 %s153, 2
        %s155 = sld [smem:[#allocation4 + %s154]]
        %s156 = smul.u32 %s155, 8
        %s157 = scalar_lea.vmem %s1, %s156
        %v158 = vld [vmem:[%s157] sm:$0x1f]
        %s159 = scalar_lea.vmem [#allocation2], 80
        %160 = vst [vmem:[%s159] sm:$0x1f] %v158
        %s161 = sadd.s32 %s154, 1
        %s162 = sld [smem:[#allocation4 + %s161]]
        %s163 = smul.u32 %s162, 8
        %s164 = scalar_lea.vmem %s1, %s163
        %v165 = vld [vmem:[%s164] sm:$0x1f]
        %166 = vst [vmem:[%s159 + $0x5] sm:$0x1f] %v165
        %s167 = sadd.s32 %s96, 6
        %s168 = smul.u32 %s167, 2
        %s169 = sld [smem:[#allocation4 + %s168]]
        %s170 = smul.u32 %s169, 8
        %s171 = scalar_lea.vmem %s1, %s170
        %v172 = vld [vmem:[%s171] sm:$0x1f]
        %s173 = scalar_lea.vmem [#allocation2], 96
        %174 = vst [vmem:[%s173] sm:$0x1f] %v172
        %s175 = sadd.s32 %s168, 1
        %s176 = sld [smem:[#allocation4 + %s175]]
        %s177 = smul.u32 %s176, 8
        %s178 = scalar_lea.vmem %s1, %s177
        %v179 = vld [vmem:[%s178] sm:$0x1f]
        %180 = vst [vmem:[%s173 + $0x5] sm:$0x1f] %v179
        %s181 = sadd.s32 %s96, 7
        %s182 = smul.u32 %s181, 2
        %s183 = sld [smem:[#allocation4 + %s182]]
        %s184 = smul.u32 %s183, 8
        %s185 = scalar_lea.vmem %s1, %s184
        %v186 = vld [vmem:[%s185] sm:$0x1f]
        %s187 = scalar_lea.vmem [#allocation2], 112
        %188 = vst [vmem:[%s187] sm:$0x1f] %v186
        %s189 = sadd.s32 %s182, 1
        %s190 = sld [smem:[#allocation4 + %s189]]
        %s191 = smul.u32 %s190, 8
        %s192 = scalar_lea.vmem %s1, %s191
        %v193 = vld [vmem:[%s192] sm:$0x1f]
        %194 = vst [vmem:[%s187 + $0x5] sm:$0x1f] %v193
        %s195 = smul.u32 %s96, 16
        %s196 = scalar_lea.vmem %s3, %s195
        %p198 = scmp.lt.u32.totalorder 10, 8
        %p199 = pneg %p198
        // Predicated region
        $region33: #{prompt_forward.3} parent=27 // pred_check
          _
        $region34: #{prompt_forward.3} parent=27 // pred_check_branch
          %201 = sbr.rel (%p198) target = $region36
        $region35: #{prompt_forward.3} parent=27 // pred_region
          %s231 = sand.u32 10, 7
          %p232 = scmp.eq.s32.totalorder %s231, 0
          %p233 = pneg %p232
          // Predicated region
          $region48: #{prompt_forward.3} parent=35 // pred_check
            _
          $region49: #{prompt_forward.3} parent=35 // pred_check_branch
            %235 = sbr.rel (%p232) target = $region51
          $region50: #{prompt_forward.3} parent=35 // pred_region
            %s236 = sand.u32 10, 7
            %s237 = ssub.s32 10, %s236
            %s238 = scalar_lea.vmem [#allocation2], %s237
            %s239 = ssub.s32 10, %s236
            %s240 = scalar_lea.vmem %s196, %s239
            loop: start=0, step=1, limit=1
            $region52: #{prompt_forward.3} parent=50 // loop_pre_header
              _
            $region53: #{prompt_forward.3} parent=50 // loop_header
              %s242 = sphi 0, %s246
              %p243 = scmp.ge.s32.totalorder %s242, 1
              %s247 = sphi [#allocation2], [#allocation2]
              %s248 = sphi %s196, %s196
            $region54: #{prompt_forward.3} parent=50 // loop_header_branch
              %245 = sbr.rel (%p243) target = $region58
            $region55: #{prompt_forward.3} parent=50 // loop_body
              %v249 = vld [vmem:[%s247] sm:$0xff]
              %250 = vst [vmem:[%s248] sm:$0xff] %v249
              %v251 = vld [vmem:[%s247 + $0x10] sm:$0xff]
              %252 = vst [vmem:[%s248 + $0x10] sm:$0xff] %v251
              %v253 = vld [vmem:[%s247 + $0x20] sm:$0xff]
              %254 = vst [vmem:[%s248 + $0x20] sm:$0xff] %v253
              %v255 = vld [vmem:[%s247 + $0x30] sm:$0xff]
              %256 = vst [vmem:[%s248 + $0x30] sm:$0xff] %v255
              %v257 = vld [vmem:[%s247 + $0x40] sm:$0xff]
              %258 = vst [vmem:[%s248 + $0x40] sm:$0xff] %v257
              %v259 = vld [vmem:[%s247 + $0x50] sm:$0xff]
              %260 = vst [vmem:[%s248 + $0x50] sm:$0xff] %v259
              %v261 = vld [vmem:[%s247 + $0x60] sm:$0xff]
              %262 = vst [vmem:[%s248 + $0x60] sm:$0xff] %v261
              %v263 = vld [vmem:[%s247 + $0x70] sm:$0xff]
              %264 = vst [vmem:[%s248 + $0x70] sm:$0xff] %v263
            $region56: #{prompt_forward.3} parent=50 // loop_footer
              %s246 = sadd.s32 1, %s242
            $region57: #{prompt_forward.3} parent=50 // loop_footer_branch
              %241 = sbr.rel target = $region53
            $region58: #{prompt_forward.3} parent=50 // loop_exit
              _
            %s265 = sshll.u32 1, %s236
            %s266 = ssub.s32 %s265, 1
            loop: start=0, step=1, limit=1
            $region59: #{prompt_forward.3} parent=50 // loop_pre_header
              _
            $region60: #{prompt_forward.3} parent=50 // loop_header
              %s268 = sphi 0, %s272
              %p269 = scmp.ge.s32.totalorder %s268, 1
              %s273 = sphi %s238, %s238
              %s274 = sphi %s240, %s240
            $region61: #{prompt_forward.3} parent=50 // loop_header_branch
              %271 = sbr.rel (%p269) target = $region65
            $region62: #{prompt_forward.3} parent=50 // loop_body
              %v275 = vld [vmem:[%s273] sm:%s266]
              %276 = vst [vmem:[%s274] sm:%s266] %v275
              %v277 = vld [vmem:[%s273 + $0x10] sm:%s266]
              %278 = vst [vmem:[%s274 + $0x10] sm:%s266] %v277
              %v279 = vld [vmem:[%s273 + $0x20] sm:%s266]
              %280 = vst [vmem:[%s274 + $0x20] sm:%s266] %v279
              %v281 = vld [vmem:[%s273 + $0x30] sm:%s266]
              %282 = vst [vmem:[%s274 + $0x30] sm:%s266] %v281
              %v283 = vld [vmem:[%s273 + $0x40] sm:%s266]
              %284 = vst [vmem:[%s274 + $0x40] sm:%s266] %v283
              %v285 = vld [vmem:[%s273 + $0x50] sm:%s266]
              %286 = vst [vmem:[%s274 + $0x50] sm:%s266] %v285
              %v287 = vld [vmem:[%s273 + $0x60] sm:%s266]
              %288 = vst [vmem:[%s274 + $0x60] sm:%s266] %v287
              %v289 = vld [vmem:[%s273 + $0x70] sm:%s266]
              %290 = vst [vmem:[%s274 + $0x70] sm:%s266] %v289
            $region63: #{prompt_forward.3} parent=50 // loop_footer
              %s272 = sadd.s32 1, %s268
            $region64: #{prompt_forward.3} parent=50 // loop_footer_branch
              %267 = sbr.rel target = $region60
            $region65: #{prompt_forward.3} parent=50 // loop_exit
              _
          $region51: #{prompt_forward.3} parent=35 // pred_fallthru
            _
        $region36: #{prompt_forward.3} parent=27 // pred_fallthru
          _
        // Predicated region
        $region37: #{prompt_forward.3} parent=27 // pred_check
          %p202 = pneg %p198
        $region38: #{prompt_forward.3} parent=27 // pred_check_branch
          %204 = sbr.rel (%p202) target = $region40
        $region39: #{prompt_forward.3} parent=27 // pred_region
          %s205 = sshll.u32 1, 10
          %s206 = ssub.s32 %s205, 1
          loop: start=0, step=1, limit=1
          $region41: #{prompt_forward.3} parent=39 // loop_pre_header
            _
          $region42: #{prompt_forward.3} parent=39 // loop_header
            %s208 = sphi 0, %s212
            %p209 = scmp.ge.s32.totalorder %s208, 1
            %s213 = sphi [#allocation2], [#allocation2]
            %s214 = sphi %s196, %s196
          $region43: #{prompt_forward.3} parent=39 // loop_header_branch
            %211 = sbr.rel (%p209) target = $region47
          $region44: #{prompt_forward.3} parent=39 // loop_body
            %v215 = vld [vmem:[%s213] sm:%s206]
            %216 = vst [vmem:[%s214] sm:%s206] %v215
            %v217 = vld [vmem:[%s213 + $0x10] sm:%s206]
            %218 = vst [vmem:[%s214 + $0x10] sm:%s206] %v217
            %v219 = vld [vmem:[%s213 + $0x20] sm:%s206]
            %220 = vst [vmem:[%s214 + $0x20] sm:%s206] %v219
            %v221 = vld [vmem:[%s213 + $0x30] sm:%s206]
            %222 = vst [vmem:[%s214 + $0x30] sm:%s206] %v221
            %v223 = vld [vmem:[%s213 + $0x40] sm:%s206]
            %224 = vst [vmem:[%s214 + $0x40] sm:%s206] %v223
            %v225 = vld [vmem:[%s213 + $0x50] sm:%s206]
            %226 = vst [vmem:[%s214 + $0x50] sm:%s206] %v225
            %v227 = vld [vmem:[%s213 + $0x60] sm:%s206]
            %228 = vst [vmem:[%s214 + $0x60] sm:%s206] %v227
            %v229 = vld [vmem:[%s213 + $0x70] sm:%s206]
            %230 = vst [vmem:[%s214 + $0x70] sm:%s206] %v229
          $region45: #{prompt_forward.3} parent=39 // loop_footer
            %s212 = sadd.s32 1, %s208
          $region46: #{prompt_forward.3} parent=39 // loop_footer_branch
            %207 = sbr.rel target = $region42
          $region47: #{prompt_forward.3} parent=39 // loop_exit
            _
        $region40: #{prompt_forward.3} parent=27 // pred_fallthru
          _
        // Predicated region
        $region66: #{prompt_forward.3} parent=27 // pred_check
          _
        $region67: #{prompt_forward.3} parent=27 // pred_check_branch
          %293 = sbr.rel (0) target = $region69
        $region68: #{prompt_forward.3} parent=27 // pred_region
          %294 = vsyncadd [#allocation3], 1280
        $region69: #{prompt_forward.3} parent=27 // pred_fallthru
          _
        %s295 = smul.u32 %s96, 24
        %s296 = scalar_lea.vmem %s4, %s295
        %s297 = scalar_lea.sflag [#allocation3], 1
        %p299 = scmp.lt.u32.totalorder 10, 8
        %p300 = pneg %p299
        // Predicated region
        $region70: #{prompt_forward.3} parent=27 // pred_check
          _
        $region71: #{prompt_forward.3} parent=27 // pred_check_branch
          %302 = sbr.rel (%p299) target = $region73
        $region72: #{prompt_forward.3} parent=27 // pred_region
          %s332 = sand.u32 10, 7
          %p333 = scmp.eq.s32.totalorder %s332, 0
          %p334 = pneg %p333
          // Predicated region
          $region85: #{prompt_forward.3} parent=72 // pred_check
            _
          $region86: #{prompt_forward.3} parent=72 // pred_check_branch
            %336 = sbr.rel (%p333) target = $region88
          $region87: #{prompt_forward.3} parent=72 // pred_region
            %s337 = sand.u32 10, 7
            %s338 = ssub.s32 10, %s337
            %s339 = scalar_lea.vmem [#allocation2], %s338
            %s340 = ssub.s32 10, %s337
            %s341 = scalar_lea.vmem %s296, %s340
            loop: start=0, step=1, limit=1
            $region89: #{prompt_forward.3} parent=87 // loop_pre_header
              _
            $region90: #{prompt_forward.3} parent=87 // loop_header
              %s343 = sphi 0, %s347
              %p344 = scmp.ge.s32.totalorder %s343, 1
              %s348 = sphi [#allocation2], [#allocation2]
              %s349 = sphi %s296, %s296
            $region91: #{prompt_forward.3} parent=87 // loop_header_branch
              %346 = sbr.rel (%p344) target = $region95
            $region92: #{prompt_forward.3} parent=87 // loop_body
              %v350 = vld [vmem:[%s348] sm:$0xff]
              %351 = vst [vmem:[%s349] sm:$0xff] %v350
              %v352 = vld [vmem:[%s348 + $0x10] sm:$0xff]
              %353 = vst [vmem:[%s349 + $0x18] sm:$0xff] %v352
              %v354 = vld [vmem:[%s348 + $0x20] sm:$0xff]
              %355 = vst [vmem:[%s349 + $0x30] sm:$0xff] %v354
              %v356 = vld [vmem:[%s348 + $0x30] sm:$0xff]
              %357 = vst [vmem:[%s349 + $0x48] sm:$0xff] %v356
              %v358 = vld [vmem:[%s348 + $0x40] sm:$0xff]
              %359 = vst [vmem:[%s349 + $0x60] sm:$0xff] %v358
              %v360 = vld [vmem:[%s348 + $0x50] sm:$0xff]
              %361 = vst [vmem:[%s349 + $0x78] sm:$0xff] %v360
              %v362 = vld [vmem:[%s348 + $0x60] sm:$0xff]
              %363 = vst [vmem:[%s349 + $0x90] sm:$0xff] %v362
              %v364 = vld [vmem:[%s348 + $0x70] sm:$0xff]
              %365 = vst [vmem:[%s349 + $0xa8] sm:$0xff] %v364
            $region93: #{prompt_forward.3} parent=87 // loop_footer
              %s347 = sadd.s32 1, %s343
            $region94: #{prompt_forward.3} parent=87 // loop_footer_branch
              %342 = sbr.rel target = $region90
            $region95: #{prompt_forward.3} parent=87 // loop_exit
              _
            %s366 = sshll.u32 1, %s337
            %s367 = ssub.s32 %s366, 1
            loop: start=0, step=1, limit=1
            $region96: #{prompt_forward.3} parent=87 // loop_pre_header
              _
            $region97: #{prompt_forward.3} parent=87 // loop_header
              %s369 = sphi 0, %s373
              %p370 = scmp.ge.s32.totalorder %s369, 1
              %s374 = sphi %s339, %s339
              %s375 = sphi %s341, %s341
            $region98: #{prompt_forward.3} parent=87 // loop_header_branch
              %372 = sbr.rel (%p370) target = $region102
            $region99: #{prompt_forward.3} parent=87 // loop_body
              %v376 = vld [vmem:[%s374] sm:%s367]
              %377 = vst [vmem:[%s375] sm:%s367] %v376
              %v378 = vld [vmem:[%s374 + $0x10] sm:%s367]
              %379 = vst [vmem:[%s375 + $0x18] sm:%s367] %v378
              %v380 = vld [vmem:[%s374 + $0x20] sm:%s367]
              %381 = vst [vmem:[%s375 + $0x30] sm:%s367] %v380
              %v382 = vld [vmem:[%s374 + $0x30] sm:%s367]
              %383 = vst [vmem:[%s375 + $0x48] sm:%s367] %v382
              %v384 = vld [vmem:[%s374 + $0x40] sm:%s367]
              %385 = vst [vmem:[%s375 + $0x60] sm:%s367] %v384
              %v386 = vld [vmem:[%s374 + $0x50] sm:%s367]
              %387 = vst [vmem:[%s375 + $0x78] sm:%s367] %v386
              %v388 = vld [vmem:[%s374 + $0x60] sm:%s367]
              %389 = vst [vmem:[%s375 + $0x90] sm:%s367] %v388
              %v390 = vld [vmem:[%s374 + $0x70] sm:%s367]
              %391 = vst [vmem:[%s375 + $0xa8] sm:%s367] %v390
            $region100: #{prompt_forward.3} parent=87 // loop_footer
              %s373 = sadd.s32 1, %s369
            $region101: #{prompt_forward.3} parent=87 // loop_footer_branch
              %368 = sbr.rel target = $region97
            $region102: #{prompt_forward.3} parent=87 // loop_exit
              _
          $region88: #{prompt_forward.3} parent=72 // pred_fallthru
            _
        $region73: #{prompt_forward.3} parent=27 // pred_fallthru
          _
        // Predicated region
        $region74: #{prompt_forward.3} parent=27 // pred_check
          %p303 = pneg %p299
        $region75: #{prompt_forward.3} parent=27 // pred_check_branch
          %305 = sbr.rel (%p303) target = $region77
        $region76: #{prompt_forward.3} parent=27 // pred_region
          %s306 = sshll.u32 1, 10
          %s307 = ssub.s32 %s306, 1
          loop: start=0, step=1, limit=1
          $region78: #{prompt_forward.3} parent=76 // loop_pre_header
            _
          $region79: #{prompt_forward.3} parent=76 // loop_header
            %s309 = sphi 0, %s313
            %p310 = scmp.ge.s32.totalorder %s309, 1
            %s314 = sphi [#allocation2], [#allocation2]
            %s315 = sphi %s296, %s296
          $region80: #{prompt_forward.3} parent=76 // loop_header_branch
            %312 = sbr.rel (%p310) target = $region84
          $region81: #{prompt_forward.3} parent=76 // loop_body
            %v316 = vld [vmem:[%s314] sm:%s307]
            %317 = vst [vmem:[%s315] sm:%s307] %v316
            %v318 = vld [vmem:[%s314 + $0x10] sm:%s307]
            %319 = vst [vmem:[%s315 + $0x18] sm:%s307] %v318
            %v320 = vld [vmem:[%s314 + $0x20] sm:%s307]
            %321 = vst [vmem:[%s315 + $0x30] sm:%s307] %v320
            %v322 = vld [vmem:[%s314 + $0x30] sm:%s307]
            %323 = vst [vmem:[%s315 + $0x48] sm:%s307] %v322
            %v324 = vld [vmem:[%s314 + $0x40] sm:%s307]
            %325 = vst [vmem:[%s315 + $0x60] sm:%s307] %v324
            %v326 = vld [vmem:[%s314 + $0x50] sm:%s307]
            %327 = vst [vmem:[%s315 + $0x78] sm:%s307] %v326
            %v328 = vld [vmem:[%s314 + $0x60] sm:%s307]
            %329 = vst [vmem:[%s315 + $0x90] sm:%s307] %v328
            %v330 = vld [vmem:[%s314 + $0x70] sm:%s307]
            %331 = vst [vmem:[%s315 + $0xa8] sm:%s307] %v330
          $region82: #{prompt_forward.3} parent=76 // loop_footer
            %s313 = sadd.s32 1, %s309
          $region83: #{prompt_forward.3} parent=76 // loop_footer_branch
            %308 = sbr.rel target = $region79
          $region84: #{prompt_forward.3} parent=76 // loop_exit
            _
        $region77: #{prompt_forward.3} parent=27 // pred_fallthru
          _
        // Predicated region
        $region103: #{prompt_forward.3} parent=27 // pred_check
          _
        $region104: #{prompt_forward.3} parent=27 // pred_check_branch
          %394 = sbr.rel (0) target = $region106
        $region105: #{prompt_forward.3} parent=27 // pred_region
          %395 = vsyncadd %s297, 1280
        $region106: #{prompt_forward.3} parent=27 // pred_fallthru
          _
        %s396 = smul.u32 8, 10
        %s397 = smul.u32 %s396, 1
        %s398 = sshll.u32 %s397, 4
        %399 = dma.done [#allocation3], %s398
        %s400 = sshll.u32 %s397, 4
        %401 = dma.done %s297, %s400
      $region28: #{prompt_forward.3} parent=5 // pred_fallthru
        _
    $region6: #{prompt_forward.3} parent=1 // loop_footer
      %s16 = sadd.s32 1, %s12
    $region7: #{prompt_forward.3} parent=1 // loop_footer_branch
      %11 = sbr.rel target = $region3
    $region8: #{prompt_forward.3} parent=1 // loop_exit
      _
    %402 = vsyncpa [#allocation5], 1
    %s403 = scalar_lea.sflag [#allocation5], 1
    %404 = vsyncpa %s403, 1
  %405 = vsyncmov [#allocation3]
  %s406 = vpop.sfrf %405
  %p407 = scmp.eq.s32.totalorder %s406, 0
  %p408 = pneg %p407
  %410 = shalt.err (%p408)
  %s411 = scalar_lea.sflag [#allocation3], 1
  %412 = vsyncmov %s411
  %s413 = vpop.sfrf %412
  %p414 = scmp.eq.s32.totalorder %s413, 0
  %p415 = pneg %p414
  %417 = shalt.err (%p415)

</llo_original>
